<compile_context>
chip_gen: v5e
topology: v5e:2x2
jax: 0.10.0
libtpu: 0.0.40
codegen_flags: <defaults>
</compile_context>

<pallas_src>
import functools

import jax
import jax.numpy as jnp
from jax.experimental import pallas as pl
from jax.experimental.pallas import tpu as pltpu


def _round_up(n, m):
    return ((n + m - 1) // m) * m


def _pad2(a, rows, cols):
    return jnp.pad(a, ((0, rows - a.shape[0]), (0, cols - a.shape[1])))


def gene_vae_kernel(x_ref, eps_ref,
                    ew1_ref, ew2_ref, wh_ref,
                    dw1_ref, dw2_ref, dw3_ref,
                    bias_ref,
                    latent_ref, out_ref,
                    *, h1p, h2p, lp, outp):
    x = x_ref[...]

    # ---- GeneEncoder: Linear -> ReLU (x2 hidden layers) ----
    h = jnp.dot(x, ew1_ref[...], preferred_element_type=jnp.float32)
    h = jnp.maximum(h + bias_ref[0, :h1p], 0.0)
    h = jnp.dot(h, ew2_ref[...], preferred_element_type=jnp.float32)
    h = jnp.maximum(h + bias_ref[1, :h2p], 0.0)

    # ---- fused mu / logvar head: one matmul, then lane-aligned split ----
    head = jnp.dot(h, wh_ref[...], preferred_element_type=jnp.float32)
    head = head + bias_ref[2, :2 * lp]
    mu = head[:, :lp]
    logvar = head[:, lp:]

    # ---- reparameterize: z = eps * exp(0.5 * logvar) + mu ----
    z = eps_ref[...] * jnp.exp(0.5 * logvar) + mu
    latent_ref[...] = z

    # ---- GeneDecoder: Linear -> ReLU (x2, hidden sizes reversed), final Linear ----
    d = jnp.dot(z, dw1_ref[...], preferred_element_type=jnp.float32)
    d = jnp.maximum(d + bias_ref[3, :h2p], 0.0)
    d = jnp.dot(d, dw2_ref[...], preferred_element_type=jnp.float32)
    d = jnp.maximum(d + bias_ref[4, :h1p], 0.0)
    out = jnp.dot(d, dw3_ref[...], preferred_element_type=jnp.float32)
    out_ref[...] = out + bias_ref[5, :outp]


def gene_vae_forward(x, eps, params, *, block_b=128):
    """x: (B, input_size), eps: (B, latent_size) standard normal noise."""
    B, input_size = x.shape
    h1 = params["ew1"].shape[1]
    h2 = params["ew2"].shape[1]
    latent_size = params["wmu"].shape[1]
    output_size = params["dw3"].shape[1]

    # Lane-dense padded feature dims (multiples of 128).
    in_p = _round_up(input_size, 128)
    h1p = _round_up(h1, 128)
    h2p = _round_up(h2, 128)
    lp = _round_up(latent_size, 128)
    op = _round_up(output_size, 128)

    # Batch tile: multiple of 8 sublanes, at most block_b.
    tb = block_b if B >= block_b else _round_up(B, 8)
    Bp = _round_up(B, tb)
    grid = (Bp // tb,)

    # Zero-padded activations / noise.
    x_p = _pad2(x.astype(jnp.float32), Bp, in_p)
    eps_p = _pad2(eps.astype(jnp.float32), Bp, lp)

    # Zero-padded weights; mu / logvar head fused along the output dim.
    ew1 = _pad2(params["ew1"], in_p, h1p)
    ew2 = _pad2(params["ew2"], h1p, h2p)
    wh = jnp.concatenate([_pad2(params["wmu"], h2p, lp),
                          _pad2(params["wlv"], h2p, lp)], axis=1)   # (h2p, 2*lp)
    dw1 = _pad2(params["dw1"], lp, h2p)
    dw2 = _pad2(params["dw2"], h2p, h1p)
    dw3 = _pad2(params["dw3"], h1p, op)

    # Pack all 6 bias vectors into one (8, maxW) VMEM input.
    max_w = max(h1p, h2p, 2 * lp, op)
    bias_pack = jnp.zeros((8, max_w), jnp.float32)
    bias_pack = bias_pack.at[0, :h1].set(params["eb1"][0])
    bias_pack = bias_pack.at[1, :h2].set(params["eb2"][0])
    bias_pack = bias_pack.at[2, :latent_size].set(params["bmu"][0])
    bias_pack = bias_pack.at[2, lp:lp + latent_size].set(params["blv"][0])
    bias_pack = bias_pack.at[3, :h2].set(params["db1"][0])
    bias_pack = bias_pack.at[4, :h1].set(params["db2"][0])
    bias_pack = bias_pack.at[5, :output_size].set(params["db3"][0])

    def resident(shape):
        # Whole-array block, constant block index -> DMA'd once, reused per step.
        return pl.BlockSpec(shape, lambda i: (0, 0))

    kernel = functools.partial(gene_vae_kernel, h1p=h1p, h2p=h2p, lp=lp, outp=op)

    latent_p, out_p = pl.pallas_call(
        kernel,
        out_shape=(jax.ShapeDtypeStruct((Bp, lp), jnp.float32),
                   jax.ShapeDtypeStruct((Bp, op), jnp.float32)),
        grid=grid,
        in_specs=[
            pl.BlockSpec((tb, in_p), lambda i: (i, 0)),   # x
            pl.BlockSpec((tb, lp), lambda i: (i, 0)),     # eps
            resident(ew1.shape),
            resident(ew2.shape),
            resident(wh.shape),
            resident(dw1.shape),
            resident(dw2.shape),
            resident(dw3.shape),
            resident(bias_pack.shape),
        ],
        out_specs=(pl.BlockSpec((tb, lp), lambda i: (i, 0)),
                   pl.BlockSpec((tb, op), lambda i: (i, 0))),
        compiler_params=pltpu.CompilerParams(
            dimension_semantics=("parallel",)),
    )(x_p, eps_p, ew1, ew2, wh, dw1, dw2, dw3, bias_pack)

    return latent_p[:B, :latent_size], out_p[:B, :output_size]


def init_params(key, input_size, hidden_sizes, latent_size, output_size):
    """Deterministic synthetic weights matching GeneVAE's layer shapes.

    Weights are stored (in_features, out_features): y = x @ W + b.
    """
    def lin(k, fan_in, fan_out):
        kw, kb = jax.random.split(k)
        w = jax.random.normal(kw, (fan_in, fan_out), jnp.float32) * 0.1
        b = jax.random.normal(kb, (1, fan_out), jnp.float32) * 0.01
        return w, b

    keys = jax.random.split(key, 7)
    h1, h2 = hidden_sizes
    params = {}
    # Encoder: input -> h1 -> h2, then mu / logvar heads (h2 -> latent)
    params["ew1"], params["eb1"] = lin(keys[0], input_size, h1)
    params["ew2"], params["eb2"] = lin(keys[1], h1, h2)
    params["wmu"], params["bmu"] = lin(keys[2], h2, latent_size)
    params["wlv"], params["blv"] = lin(keys[3], h2, latent_size)
    # Decoder: latent -> h2 -> h1 -> output (hidden_sizes reversed)
    params["dw1"], params["db1"] = lin(keys[4], latent_size, h2)
    params["dw2"], params["db2"] = lin(keys[5], h2, h1)
    params["dw3"], params["db3"] = lin(keys[6], h1, output_size)
    return params


if __name__ == "__main__":
    input_size = 32
    hidden_sizes = [64, 32]
    latent_size = 16
    output_size = 32
    batch = 256          # exercises the 2-step batch grid (block_b=128)

    key = jax.random.PRNGKey(0)
    k_params, k_x, k_eps = jax.random.split(key, 3)

    params = init_params(k_params, input_size, hidden_sizes, latent_size, output_size)
    x = jax.random.normal(k_x, (batch, input_size), jnp.float32)
    eps = jax.random.normal(k_eps, (batch, latent_size), jnp.float32)

    latent, outputs = gene_vae_forward(x, eps, params, block_b=128)
    jax.block_until_ready((latent, outputs))

    assert latent.shape == (batch, latent_size)
    assert outputs.shape == (batch, output_size)

    # Pure-JAX reference check (same math, outside Pallas).
    def ref_forward(x, eps, p):
        h = jnp.maximum(x @ p["ew1"] + p["eb1"], 0.0)
        h = jnp.maximum(h @ p["ew2"] + p["eb2"], 0.0)
        mu = h @ p["wmu"] + p["bmu"]
        logvar = h @ p["wlv"] + p["blv"]
        z = eps * jnp.exp(0.5 * logvar) + mu
        d = jnp.maximum(z @ p["dw1"] + p["db1"], 0.0)
        d = jnp.maximum(d @ p["dw2"] + p["db2"], 0.0)
        return z, d @ p["dw3"] + p["db3"]

    z_ref, out_ref = ref_forward(x, eps, params)
    assert jnp.allclose(latent, z_ref, atol=1e-4, rtol=1e-4)
    assert jnp.allclose(outputs, out_ref, atol=1e-4, rtol=1e-4)

    print("KERNEL_OK")
</pallas_src>

<mosaic_0001>
module attributes {stable_mosaic.version = 11 : i64} {
  func.func @gene_vae_kernel(%arg0: i32, %arg1: memref<128x128xf32, #tpu.memory_space<vmem>>, %arg2: memref<128x128xf32, #tpu.memory_space<vmem>>, %arg3: memref<128x128xf32, #tpu.memory_space<vmem>>, %arg4: memref<128x128xf32, #tpu.memory_space<vmem>>, %arg5: memref<128x256xf32, #tpu.memory_space<vmem>>, %arg6: memref<128x128xf32, #tpu.memory_space<vmem>>, %arg7: memref<128x128xf32, #tpu.memory_space<vmem>>, %arg8: memref<128x128xf32, #tpu.memory_space<vmem>>, %arg9: memref<8x256xf32, #tpu.memory_space<vmem>>, %arg10: memref<128x128xf32, #tpu.memory_space<vmem>>, %arg11: memref<128x128xf32, #tpu.memory_space<vmem>>) attributes {dimension_semantics = [#tpu.dimension_semantics<parallel>], iteration_bounds = array<i64: 2>, scalar_prefetch = 0 : i64, scratch_operands = 0 : i64, tpu.core_type = #tpu.core_type<tc>, window_params = [{transform_indices = @transform_0, window_bounds = array<i64: 128, 128>}, {transform_indices = @transform_1, window_bounds = array<i64: 128, 128>}, {pipeline_mode = #tpu.pipeline_mode<synchronous>, transform_indices = @transform_2, window_bounds = array<i64: 128, 128>}, {pipeline_mode = #tpu.pipeline_mode<synchronous>, transform_indices = @transform_3, window_bounds = array<i64: 128, 128>}, {pipeline_mode = #tpu.pipeline_mode<synchronous>, transform_indices = @transform_4, window_bounds = array<i64: 128, 256>}, {pipeline_mode = #tpu.pipeline_mode<synchronous>, transform_indices = @transform_5, window_bounds = array<i64: 128, 128>}, {pipeline_mode = #tpu.pipeline_mode<synchronous>, transform_indices = @transform_6, window_bounds = array<i64: 128, 128>}, {pipeline_mode = #tpu.pipeline_mode<synchronous>, transform_indices = @transform_7, window_bounds = array<i64: 128, 128>}, {pipeline_mode = #tpu.pipeline_mode<synchronous>, transform_indices = @transform_8, window_bounds = array<i64: 8, 256>}, {transform_indices = @transform_9, window_bounds = array<i64: 128, 128>}, {transform_indices = @transform_10, window_bounds = array<i64: 128, 128>}]} {
    %c0 = arith.constant 0 : index
    %c0_0 = arith.constant 0 : index
    %0 = vector.load %arg1[%c0, %c0_0] : memref<128x128xf32, #tpu.memory_space<vmem>>, vector<128x128xf32>
    %c0_1 = arith.constant 0 : index
    %c0_2 = arith.constant 0 : index
    %1 = vector.load %arg3[%c0_1, %c0_2] : memref<128x128xf32, #tpu.memory_space<vmem>>, vector<128x128xf32>
    %cst = arith.constant dense<0.000000e+00> : vector<128x128xf32>
    %2 = tpu.matmul %0, %1, %cst {dimension_numbers = #tpu.dot_dimension_numbers<[1], [0], [0], [1], [0, 0, 1, 1], [], []>} : vector<128x128xf32>, vector<128x128xf32>, vector<128x128xf32> -> vector<128x128xf32>
    %c0_3 = arith.constant 0 : index
    %c0_4 = arith.constant 0 : index
    %3 = vector.load %arg9[%c0_3, %c0_4] : memref<8x256xf32, #tpu.memory_space<vmem>>, vector<1x128xf32>
    %4 = vector.shape_cast %3 : vector<1x128xf32> to vector<128xf32>
    %5 = vector.shape_cast %4 : vector<128xf32> to vector<1x128xf32>
    %6 = vector.broadcast %5 : vector<1x128xf32> to vector<128x128xf32>
    %7 = arith.addf %2, %6 : vector<128x128xf32>
    %cst_5 = arith.constant 0.000000e+00 : f32
    %8 = vector.broadcast %cst_5 : f32 to vector<128x128xf32>
    %9 = arith.maximumf %7, %8 : vector<128x128xf32>
    %c0_6 = arith.constant 0 : index
    %c0_7 = arith.constant 0 : index
    %10 = vector.load %arg4[%c0_6, %c0_7] : memref<128x128xf32, #tpu.memory_space<vmem>>, vector<128x128xf32>
    %cst_8 = arith.constant dense<0.000000e+00> : vector<128x128xf32>
    %11 = tpu.matmul %9, %10, %cst_8 {dimension_numbers = #tpu.dot_dimension_numbers<[1], [0], [0], [1], [0, 0, 1, 1], [], []>} : vector<128x128xf32>, vector<128x128xf32>, vector<128x128xf32> -> vector<128x128xf32>
    %c1 = arith.constant 1 : index
    %c0_9 = arith.constant 0 : index
    %12 = vector.load %arg9[%c1, %c0_9] : memref<8x256xf32, #tpu.memory_space<vmem>>, vector<1x128xf32>
    %13 = vector.shape_cast %12 : vector<1x128xf32> to vector<128xf32>
    %14 = vector.shape_cast %13 : vector<128xf32> to vector<1x128xf32>
    %15 = vector.broadcast %14 : vector<1x128xf32> to vector<128x128xf32>
    %16 = arith.addf %11, %15 : vector<128x128xf32>
    %cst_10 = arith.constant 0.000000e+00 : f32
    %17 = vector.broadcast %cst_10 : f32 to vector<128x128xf32>
    %18 = arith.maximumf %16, %17 : vector<128x128xf32>
    %c0_11 = arith.constant 0 : index
    %c0_12 = arith.constant 0 : index
    %19 = vector.load %arg5[%c0_11, %c0_12] : memref<128x256xf32, #tpu.memory_space<vmem>>, vector<128x256xf32>
    %cst_13 = arith.constant dense<0.000000e+00> : vector<128x256xf32>
    %20 = tpu.matmul %18, %19, %cst_13 {dimension_numbers = #tpu.dot_dimension_numbers<[1], [0], [0], [1], [0, 0, 1, 1], [], []>} : vector<128x128xf32>, vector<128x256xf32>, vector<128x256xf32> -> vector<128x256xf32>
    %c2 = arith.constant 2 : index
    %c0_14 = arith.constant 0 : index
    %21 = vector.load %arg9[%c2, %c0_14] : memref<8x256xf32, #tpu.memory_space<vmem>>, vector<1x256xf32>
    %22 = vector.shape_cast %21 : vector<1x256xf32> to vector<256xf32>
    %23 = vector.shape_cast %22 : vector<256xf32> to vector<1x256xf32>
    %24 = vector.broadcast %23 : vector<1x256xf32> to vector<128x256xf32>
    %25 = arith.addf %20, %24 : vector<128x256xf32>
    %26 = vector.extract_strided_slice %25 {offsets = [0, 0], sizes = [128, 128], strides = [1, 1]} : vector<128x256xf32> to vector<128x128xf32>
    %27 = vector.extract_strided_slice %25 {offsets = [0, 128], sizes = [128, 128], strides = [1, 1]} : vector<128x256xf32> to vector<128x128xf32>
    %c0_15 = arith.constant 0 : index
    %c0_16 = arith.constant 0 : index
    %28 = vector.load %arg2[%c0_15, %c0_16] : memref<128x128xf32, #tpu.memory_space<vmem>>, vector<128x128xf32>
    %cst_17 = arith.constant 5.000000e-01 : f32
    %29 = vector.broadcast %cst_17 : f32 to vector<128x128xf32>
    %30 = arith.mulf %29, %27 : vector<128x128xf32>
    %31 = math.exp %30 : vector<128x128xf32>
    %32 = arith.mulf %28, %31 : vector<128x128xf32>
    %33 = arith.addf %32, %26 : vector<128x128xf32>
    %c0_18 = arith.constant 0 : index
    %c0_19 = arith.constant 0 : index
    %34 = vector.load %arg10[%c0_18, %c0_19] : memref<128x128xf32, #tpu.memory_space<vmem>>, vector<128x128xf32>
    tpu.vector_store %arg10[%c0_18, %c0_19], %33 {strides = array<i32>} : memref<128x128xf32, #tpu.memory_space<vmem>>, vector<128x128xf32>,
    %c0_20 = arith.constant 0 : index
    %c0_21 = arith.constant 0 : index
    %35 = vector.load %arg6[%c0_20, %c0_21] : memref<128x128xf32, #tpu.memory_space<vmem>>, vector<128x128xf32>
    %cst_22 = arith.constant dense<0.000000e+00> : vector<128x128xf32>
    %36 = tpu.matmul %33, %35, %cst_22 {dimension_numbers = #tpu.dot_dimension_numbers<[1], [0], [0], [1], [0, 0, 1, 1], [], []>} : vector<128x128xf32>, vector<128x128xf32>, vector<128x128xf32> -> vector<128x128xf32>
    %c3 = arith.constant 3 : index
    %c0_23 = arith.constant 0 : index
    %37 = vector.load %arg9[%c3, %c0_23] : memref<8x256xf32, #tpu.memory_space<vmem>>, vector<1x128xf32>
    %38 = vector.shape_cast %37 : vector<1x128xf32> to vector<128xf32>
    %39 = vector.shape_cast %38 : vector<128xf32> to vector<1x128xf32>
    %40 = vector.broadcast %39 : vector<1x128xf32> to vector<128x128xf32>
    %41 = arith.addf %36, %40 : vector<128x128xf32>
    %cst_24 = arith.constant 0.000000e+00 : f32
    %42 = vector.broadcast %cst_24 : f32 to vector<128x128xf32>
    %43 = arith.maximumf %41, %42 : vector<128x128xf32>
    %c0_25 = arith.constant 0 : index
    %c0_26 = arith.constant 0 : index
    %44 = vector.load %arg7[%c0_25, %c0_26] : memref<128x128xf32, #tpu.memory_space<vmem>>, vector<128x128xf32>
    %cst_27 = arith.constant dense<0.000000e+00> : vector<128x128xf32>
    %45 = tpu.matmul %43, %44, %cst_27 {dimension_numbers = #tpu.dot_dimension_numbers<[1], [0], [0], [1], [0, 0, 1, 1], [], []>} : vector<128x128xf32>, vector<128x128xf32>, vector<128x128xf32> -> vector<128x128xf32>
    %c4 = arith.constant 4 : index
    %c0_28 = arith.constant 0 : index
    %46 = vector.load %arg9[%c4, %c0_28] : memref<8x256xf32, #tpu.memory_space<vmem>>, vector<1x128xf32>
    %47 = vector.shape_cast %46 : vector<1x128xf32> to vector<128xf32>
    %48 = vector.shape_cast %47 : vector<128xf32> to vector<1x128xf32>
    %49 = vector.broadcast %48 : vector<1x128xf32> to vector<128x128xf32>
    %50 = arith.addf %45, %49 : vector<128x128xf32>
    %cst_29 = arith.constant 0.000000e+00 : f32
    %51 = vector.broadcast %cst_29 : f32 to vector<128x128xf32>
    %52 = arith.maximumf %50, %51 : vector<128x128xf32>
    %c0_30 = arith.constant 0 : index
    %c0_31 = arith.constant 0 : index
    %53 = vector.load %arg8[%c0_30, %c0_31] : memref<128x128xf32, #tpu.memory_space<vmem>>, vector<128x128xf32>
    %cst_32 = arith.constant dense<0.000000e+00> : vector<128x128xf32>
    %54 = tpu.matmul %52, %53, %cst_32 {dimension_numbers = #tpu.dot_dimension_numbers<[1], [0], [0], [1], [0, 0, 1, 1], [], []>} : vector<128x128xf32>, vector<128x128xf32>, vector<128x128xf32> -> vector<128x128xf32>
    %c5 = arith.constant 5 : index
    %c0_33 = arith.constant 0 : index
    %55 = vector.load %arg9[%c5, %c0_33] : memref<8x256xf32, #tpu.memory_space<vmem>>, vector<1x128xf32>
    %56 = vector.shape_cast %55 : vector<1x128xf32> to vector<128xf32>
    %57 = vector.shape_cast %56 : vector<128xf32> to vector<1x128xf32>
    %58 = vector.broadcast %57 : vector<1x128xf32> to vector<128x128xf32>
    %59 = arith.addf %54, %58 : vector<128x128xf32>
    %c0_34 = arith.constant 0 : index
    %c0_35 = arith.constant 0 : index
    %60 = vector.load %arg11[%c0_34, %c0_35] : memref<128x128xf32, #tpu.memory_space<vmem>>, vector<128x128xf32>
    tpu.vector_store %arg11[%c0_34, %c0_35], %59 {strides = array<i32>} : memref<128x128xf32, #tpu.memory_space<vmem>>, vector<128x128xf32>,
    return
  }
  func.func @transform_0(%arg0: i32) -> (i32, i32) {
    %c0_i32 = arith.constant 0 : i32
    %c0_i32_0 = arith.constant 0 : i32
    return %arg0, %c0_i32 : i32, i32
  }
  func.func @transform_1(%arg0: i32) -> (i32, i32) {
    %c0_i32 = arith.constant 0 : i32
    %c0_i32_0 = arith.constant 0 : i32
    return %arg0, %c0_i32 : i32, i32
  }
  func.func @transform_2(%arg0: i32) -> (i32, i32) {
    %c0_i32 = arith.constant 0 : i32
    %c0_i32_0 = arith.constant 0 : i32
    %c0_i32_1 = arith.constant 0 : i32
    return %c0_i32, %c0_i32_0 : i32, i32
  }
  func.func @transform_3(%arg0: i32) -> (i32, i32) {
    %c0_i32 = arith.constant 0 : i32
    %c0_i32_0 = arith.constant 0 : i32
    %c0_i32_1 = arith.constant 0 : i32
    return %c0_i32, %c0_i32_0 : i32, i32
  }
  func.func @transform_4(%arg0: i32) -> (i32, i32) {
    %c0_i32 = arith.constant 0 : i32
    %c0_i32_0 = arith.constant 0 : i32
    %c0_i32_1 = arith.constant 0 : i32
    return %c0_i32, %c0_i32_0 : i32, i32
  }
  func.func @transform_5(%arg0: i32) -> (i32, i32) {
    %c0_i32 = arith.constant 0 : i32
    %c0_i32_0 = arith.constant 0 : i32
    %c0_i32_1 = arith.constant 0 : i32
    return %c0_i32, %c0_i32_0 : i32, i32
  }
  func.func @transform_6(%arg0: i32) -> (i32, i32) {
    %c0_i32 = arith.constant 0 : i32
    %c0_i32_0 = arith.constant 0 : i32
    %c0_i32_1 = arith.constant 0 : i32
    return %c0_i32, %c0_i32_0 : i32, i32
  }
  func.func @transform_7(%arg0: i32) -> (i32, i32) {
    %c0_i32 = arith.constant 0 : i32
    %c0_i32_0 = arith.constant 0 : i32
    %c0_i32_1 = arith.constant 0 : i32
    return %c0_i32, %c0_i32_0 : i32, i32
  }
  func.func @transform_8(%arg0: i32) -> (i32, i32) {
    %c0_i32 = arith.constant 0 : i32
    %c0_i32_0 = arith.constant 0 : i32
    %c0_i32_1 = arith.constant 0 : i32
    return %c0_i32, %c0_i32_0 : i32, i32
  }
  func.func @transform_9(%arg0: i32) -> (i32, i32) {
    %c0_i32 = arith.constant 0 : i32
    %c0_i32_0 = arith.constant 0 : i32
    return %arg0, %c0_i32 : i32, i32
  }
  func.func @transform_10(%arg0: i32) -> (i32, i32) {
    %c0_i32 = arith.constant 0 : i32
    %c0_i32_0 = arith.constant 0 : i32
    return %arg0, %c0_i32 : i32, i32
  }
}

</mosaic_0001>

<llo_original>
// kernel: tpu_custom_call.1
$region0: #{tpu_custom_call.1}
  #allocation0 [shape = 'u32[]', space=smem, size = 0x4, offset = 0x4, fixed_abs, tag = 'smem constant byte address 0x4 - core index']
  #allocation1 [shape = 'u32[72,128]{1,0:T(1,128)}', space=vmem, size = 0x9000, scoped, tag = 'internal scratch']
  %s0 = inlined_call_operand.hbm [shape: f32[256,128], index: 0, kind: input, shape index: {}]
  %s1 = inlined_call_operand.hbm [shape: f32[256,128], index: 1, kind: input, shape index: {}]
  %s2 = inlined_call_operand.hbm [shape: f32[128,128], index: 2, kind: input, shape index: {}]
  %s3 = inlined_call_operand.hbm [shape: f32[128,128], index: 3, kind: input, shape index: {}]
  %s4 = inlined_call_operand.hbm [shape: f32[128,256], index: 4, kind: input, shape index: {}]
  %s5 = inlined_call_operand.hbm [shape: f32[128,128], index: 5, kind: input, shape index: {}]
  %s6 = inlined_call_operand.hbm [shape: f32[128,128], index: 6, kind: input, shape index: {}]
  %s7 = inlined_call_operand.hbm [shape: f32[128,128], index: 7, kind: input, shape index: {}]
  %s8 = inlined_call_operand.hbm [shape: f32[8,256], index: 8, kind: input, shape index: {}]
  %s9 = inlined_call_operand.hbm [shape: f32[256,128], index: 9, kind: output, shape index: {0}]
  %s10 = inlined_call_operand.hbm [shape: f32[256,128], index: 10, kind: output, shape index: {1}]
  %11 = xla_tuple %s9, %s10
  %s12 = sld [smem:[#allocation0]]
  $region113: #{tpu_custom_call.1} parent=0
    _
  %s14 = ssub.s32 1, %s12
  %s15 = scalar_select 0, %s14, %s12
  $region1: #{tpu_custom_call.1} parent=0
    #allocation2 [shape = 'u8[131072]{0}', space=vmem, size = 0x20000, scoped, tag = 'input window, operand 0']
    #allocation3 [shape = 's32[2]{0}', space=sflag, size = 0x8, scoped, tag = 'scoped memory for tpu_custom_call.1']
    #allocation4 [shape = 's32[2]{0}', space=sflag, size = 0x8, scoped, tag = 'scoped memory for tpu_custom_call.1']
    #allocation5 [shape = 'u8[131072]{0}', space=vmem, size = 0x20000, scoped, tag = 'input window, operand 1']
    #allocation6 [shape = 's32[2]{0}', space=sflag, size = 0x8, scoped, tag = 'scoped memory for tpu_custom_call.1']
    #allocation7 [shape = 'u8[65536]{0}', space=vmem, size = 0x10000, scoped, tag = 'input window, operand 2, single buffered']
    #allocation8 [shape = 'u8[65536]{0}', space=vmem, size = 0x10000, scoped, tag = 'input window, operand 3, single buffered']
    #allocation9 [shape = 's32[1]{0}', space=sflag, size = 0x4, scoped, tag = 'scoped memory for tpu_custom_call.1']
    #allocation10 [shape = 'u8[131072]{0}', space=vmem, size = 0x20000, scoped, tag = 'input window, operand 4, single buffered']
    #allocation11 [shape = 'u8[65536]{0}', space=vmem, size = 0x10000, scoped, tag = 'input window, operand 5, single buffered']
    #allocation12 [shape = 's32[1]{0}', space=sflag, size = 0x4, scoped, tag = 'scoped memory for tpu_custom_call.1']
    #allocation13 [shape = 'u8[65536]{0}', space=vmem, size = 0x10000, scoped, tag = 'input window, operand 6, single buffered']
    #allocation14 [shape = 'u8[65536]{0}', space=vmem, size = 0x10000, scoped, tag = 'input window, operand 7, single buffered']
    #allocation15 [shape = 's32[1]{0}', space=sflag, size = 0x4, scoped, tag = 'scoped memory for tpu_custom_call.1']
    #allocation16 [shape = 'u8[8192]{0}', space=vmem, size = 0x2000, scoped, tag = 'input window, operand 8, single buffered']
    #allocation17 [shape = 'u8[131072]{0}', space=vmem, size = 0x20000, scoped, tag = 'output window, operand 0']
    #allocation18 [shape = 'u8[131072]{0}', space=vmem, size = 0x20000, scoped, tag = 'output window, operand 1']
    #allocation19 [shape = 's32[2]{0}', space=sflag, size = 0x8, scoped, tag = 'scoped memory for tpu_custom_call.1']
    %16 = vsyncpa [#allocation3], 0
    %s17 = scalar_lea.sflag [#allocation3], 1
    %18 = vsyncpa %s17, 0
    %19 = vsyncpa [#allocation6], 0
    %s20 = scalar_lea.sflag [#allocation6], 1
    %21 = vsyncpa %s20, 0
    %22 = vsyncpa [#allocation9], 0
    %23 = vsyncpa [#allocation12], 0
    %24 = vsyncpa [#allocation15], 0
    %25 = vsyncpa [#allocation4], 0
    %s26 = scalar_lea.sflag [#allocation4], 1
    %27 = vsyncpa %s26, 0
    %28 = vsyncpa [#allocation19], 0
    %s29 = scalar_lea.sflag [#allocation19], 1
    %30 = vsyncpa %s29, 0
    loop: start=0, step=1, limit=4
    $region2: #{tpu_custom_call.1} parent=1 // loop_pre_header
      _
    $region3: #{tpu_custom_call.1} parent=1 // loop_header
      %s32 = sphi 0, %s36
      %p33 = scmp.ge.s32.totalorder %s32, 4
      %s42 = sphi 0, %s44
      %s45 = sphi 0, %s42
      %s46 = sphi 0, %s45
      %s62 = sphi 0, %s46
      %s68 = sphi 0, %s70
      %s71 = sphi 0, %s68
      %s72 = sphi 0, %s71
      %s88 = sphi 0, %s72
      %s92 = sphi 0, %s92
      %s94 = sphi 0, %s92
      %s95 = sphi 0, %s94
      %s109 = sphi 0, %s95
      %s113 = sphi 0, %s113
      %s115 = sphi 0, %s113
      %s116 = sphi 0, %s115
      %s130 = sphi 0, %s116
      %s134 = sphi 0, %s134
      %s136 = sphi 0, %s134
      %s137 = sphi 0, %s136
      %s151 = sphi 0, %s137
      %s155 = sphi 0, %s155
      %s157 = sphi 0, %s155
      %s158 = sphi 0, %s157
      %s172 = sphi 0, %s158
      %s176 = sphi 0, %s176
      %s178 = sphi 0, %s176
      %s179 = sphi 0, %s178
      %s193 = sphi 0, %s179
      %s197 = sphi 0, %s197
      %s199 = sphi 0, %s197
      %s200 = sphi 0, %s199
      %s214 = sphi 0, %s200
      %s218 = sphi 0, %s218
      %s220 = sphi 0, %s218
      %s221 = sphi 0, %s220
      %s235 = sphi 0, %s221
      %s241 = sphi 0, %s243
      %s244 = sphi 0, %s241
      %s245 = sphi 0, %s244
      %s261 = sphi 0, %s245
      %s267 = sphi 0, %s269
      %s270 = sphi 0, %s267
      %s271 = sphi 0, %s270
      %s287 = sphi 0, %s271
    $region4: #{tpu_custom_call.1} parent=1 // loop_header_branch
      %35 = sbr.rel (%p33) target = $region8
    $region5: #{tpu_custom_call.1} parent=1 // loop_body
      %s37 = ssub.s32 %s32, 1
      %s38 = ssub.s32 %s32, 2
      %s39 = sadd.s32 %s32, 1
      %s40 = ssub.s32 %s32, %s39
      %p41 = scmp.eq.s32.totalorder %s40, 0
      %s43 = sadd.s32 %s42, 1
      %s44 = scalar_select %p41, %s42, %s43
      %p47 = pneg %p41
      %p48 = scmp.eq.s32.totalorder %s32, 1
      %p49 = por %p47, %p48
      %p50 = scmp.ne.s32.totalorder %s42, %s45
      %p51 = scmp.eq.s32.totalorder %s32, 0
      %p52 = por %p50, %p51
      %p53 = scmp.ne.s32.totalorder %s42, %s45
      %p54 = scmp.eq.s32.totalorder %s37, 1
      %p55 = por %p53, %p54
      %p56 = scmp.ne.s32.totalorder %s45, %s46
      %p57 = scmp.eq.s32.totalorder %s37, 0
      %p58 = por %p56, %p57
      %p59 = scmp.ne.s32.totalorder %s45, %s46
      %p60 = scmp.eq.s32.totalorder %s38, 1
      %p61 = por %p59, %p60
      %p63 = scmp.ne.s32.totalorder %s46, %s62
      %p64 = scmp.eq.s32.totalorder %s38, 0
      %p65 = por %p63, %p64
      %s66 = ssub.s32 %s32, %s39
      %p67 = scmp.eq.s32.totalorder %s66, 0
      %s69 = sadd.s32 %s68, 1
      %s70 = scalar_select %p67, %s68, %s69
      %p73 = pneg %p67
      %p74 = scmp.eq.s32.totalorder %s32, 1
      %p75 = por %p73, %p74
      %p76 = scmp.ne.s32.totalorder %s68, %s71
      %p77 = scmp.eq.s32.totalorder %s32, 0
      %p78 = por %p76, %p77
      %p79 = scmp.ne.s32.totalorder %s68, %s71
      %p80 = scmp.eq.s32.totalorder %s37, 1
      %p81 = por %p79, %p80
      %p82 = scmp.ne.s32.totalorder %s71, %s72
      %p83 = scmp.eq.s32.totalorder %s37, 0
      %p84 = por %p82, %p83
      %p85 = scmp.ne.s32.totalorder %s71, %s72
      %p86 = scmp.eq.s32.totalorder %s38, 1
      %p87 = por %p85, %p86
      %p89 = scmp.ne.s32.totalorder %s72, %s88
      %p90 = scmp.eq.s32.totalorder %s38, 0
      %p91 = por %p89, %p90
      %s93 = sadd.s32 %s92, 1
      %p96 = scmp.eq.s32.totalorder %s32, 1
      %p97 = scmp.ne.s32.totalorder %s92, %s94
      %p98 = scmp.eq.s32.totalorder %s32, 0
      %p99 = por %p97, %p98
      %p100 = scmp.ne.s32.totalorder %s92, %s94
      %p101 = scmp.eq.s32.totalorder %s37, 1
      %p102 = por %p100, %p101
      %p103 = scmp.ne.s32.totalorder %s94, %s95
      %p104 = scmp.eq.s32.totalorder %s37, 0
      %p105 = por %p103, %p104
      %p106 = scmp.ne.s32.totalorder %s94, %s95
      %p107 = scmp.eq.s32.totalorder %s38, 1
      %p108 = por %p106, %p107
      %p110 = scmp.ne.s32.totalorder %s95, %s109
      %p111 = scmp.eq.s32.totalorder %s38, 0
      %p112 = por %p110, %p111
      %s114 = sadd.s32 %s113, 1
      %p117 = scmp.eq.s32.totalorder %s32, 1
      %p118 = scmp.ne.s32.totalorder %s113, %s115
      %p119 = scmp.eq.s32.totalorder %s32, 0
      %p120 = por %p118, %p119
      %p121 = scmp.ne.s32.totalorder %s113, %s115
      %p122 = scmp.eq.s32.totalorder %s37, 1
      %p123 = por %p121, %p122
      %p124 = scmp.ne.s32.totalorder %s115, %s116
      %p125 = scmp.eq.s32.totalorder %s37, 0
      %p126 = por %p124, %p125
      %p127 = scmp.ne.s32.totalorder %s115, %s116
      %p128 = scmp.eq.s32.totalorder %s38, 1
      %p129 = por %p127, %p128
      %p131 = scmp.ne.s32.totalorder %s116, %s130
      %p132 = scmp.eq.s32.totalorder %s38, 0
      %p133 = por %p131, %p132
      %s135 = sadd.s32 %s134, 1
      %p138 = scmp.eq.s32.totalorder %s32, 1
      %p139 = scmp.ne.s32.totalorder %s134, %s136
      %p140 = scmp.eq.s32.totalorder %s32, 0
      %p141 = por %p139, %p140
      %p142 = scmp.ne.s32.totalorder %s134, %s136
      %p143 = scmp.eq.s32.totalorder %s37, 1
      %p144 = por %p142, %p143
      %p145 = scmp.ne.s32.totalorder %s136, %s137
      %p146 = scmp.eq.s32.totalorder %s37, 0
      %p147 = por %p145, %p146
      %p148 = scmp.ne.s32.totalorder %s136, %s137
      %p149 = scmp.eq.s32.totalorder %s38, 1
      %p150 = por %p148, %p149
      %p152 = scmp.ne.s32.totalorder %s137, %s151
      %p153 = scmp.eq.s32.totalorder %s38, 0
      %p154 = por %p152, %p153
      %s156 = sadd.s32 %s155, 1
      %p159 = scmp.eq.s32.totalorder %s32, 1
      %p160 = scmp.ne.s32.totalorder %s155, %s157
      %p161 = scmp.eq.s32.totalorder %s32, 0
      %p162 = por %p160, %p161
      %p163 = scmp.ne.s32.totalorder %s155, %s157
      %p164 = scmp.eq.s32.totalorder %s37, 1
      %p165 = por %p163, %p164
      %p166 = scmp.ne.s32.totalorder %s157, %s158
      %p167 = scmp.eq.s32.totalorder %s37, 0
      %p168 = por %p166, %p167
      %p169 = scmp.ne.s32.totalorder %s157, %s158
      %p170 = scmp.eq.s32.totalorder %s38, 1
      %p171 = por %p169, %p170
      %p173 = scmp.ne.s32.totalorder %s158, %s172
      %p174 = scmp.eq.s32.totalorder %s38, 0
      %p175 = por %p173, %p174
      %s177 = sadd.s32 %s176, 1
      %p180 = scmp.eq.s32.totalorder %s32, 1
      %p181 = scmp.ne.s32.totalorder %s176, %s178
      %p182 = scmp.eq.s32.totalorder %s32, 0
      %p183 = por %p181, %p182
      %p184 = scmp.ne.s32.totalorder %s176, %s178
      %p185 = scmp.eq.s32.totalorder %s37, 1
      %p186 = por %p184, %p185
      %p187 = scmp.ne.s32.totalorder %s178, %s179
      %p188 = scmp.eq.s32.totalorder %s37, 0
      %p189 = por %p187, %p188
      %p190 = scmp.ne.s32.totalorder %s178, %s179
      %p191 = scmp.eq.s32.totalorder %s38, 1
      %p192 = por %p190, %p191
      %p194 = scmp.ne.s32.totalorder %s179, %s193
      %p195 = scmp.eq.s32.totalorder %s38, 0
      %p196 = por %p194, %p195
      %s198 = sadd.s32 %s197, 1
      %p201 = scmp.eq.s32.totalorder %s32, 1
      %p202 = scmp.ne.s32.totalorder %s197, %s199
      %p203 = scmp.eq.s32.totalorder %s32, 0
      %p204 = por %p202, %p203
      %p205 = scmp.ne.s32.totalorder %s197, %s199
      %p206 = scmp.eq.s32.totalorder %s37, 1
      %p207 = por %p205, %p206
      %p208 = scmp.ne.s32.totalorder %s199, %s200
      %p209 = scmp.eq.s32.totalorder %s37, 0
      %p210 = por %p208, %p209
      %p211 = scmp.ne.s32.totalorder %s199, %s200
      %p212 = scmp.eq.s32.totalorder %s38, 1
      %p213 = por %p211, %p212
      %p215 = scmp.ne.s32.totalorder %s200, %s214
      %p216 = scmp.eq.s32.totalorder %s38, 0
      %p217 = por %p215, %p216
      %s219 = sadd.s32 %s218, 1
      %p222 = scmp.eq.s32.totalorder %s32, 1
      %p223 = scmp.ne.s32.totalorder %s218, %s220
      %p224 = scmp.eq.s32.totalorder %s32, 0
      %p225 = por %p223, %p224
      %p226 = scmp.ne.s32.totalorder %s218, %s220
      %p227 = scmp.eq.s32.totalorder %s37, 1
      %p228 = por %p226, %p227
      %p229 = scmp.ne.s32.totalorder %s220, %s221
      %p230 = scmp.eq.s32.totalorder %s37, 0
      %p231 = por %p229, %p230
      %p232 = scmp.ne.s32.totalorder %s220, %s221
      %p233 = scmp.eq.s32.totalorder %s38, 1
      %p234 = por %p232, %p233
      %p236 = scmp.ne.s32.totalorder %s221, %s235
      %p237 = scmp.eq.s32.totalorder %s38, 0
      %p238 = por %p236, %p237
      %s239 = ssub.s32 %s32, %s39
      %p240 = scmp.eq.s32.totalorder %s239, 0
      %s242 = sadd.s32 %s241, 1
      %s243 = scalar_select %p240, %s241, %s242
      %p246 = pneg %p240
      %p247 = scmp.eq.s32.totalorder %s32, 1
      %p248 = por %p246, %p247
      %p249 = scmp.ne.s32.totalorder %s241, %s244
      %p250 = scmp.eq.s32.totalorder %s32, 0
      %p251 = por %p249, %p250
      %p252 = scmp.ne.s32.totalorder %s241, %s244
      %p253 = scmp.eq.s32.totalorder %s37, 1
      %p254 = por %p252, %p253
      %p255 = scmp.ne.s32.totalorder %s244, %s245
      %p256 = scmp.eq.s32.totalorder %s37, 0
      %p257 = por %p255, %p256
      %p258 = scmp.ne.s32.totalorder %s244, %s245
      %p259 = scmp.eq.s32.totalorder %s38, 1
      %p260 = por %p258, %p259
      %p262 = scmp.ne.s32.totalorder %s245, %s261
      %p263 = scmp.eq.s32.totalorder %s38, 0
      %p264 = por %p262, %p263
      %s265 = ssub.s32 %s32, %s39
      %p266 = scmp.eq.s32.totalorder %s265, 0
      %s268 = sadd.s32 %s267, 1
      %s269 = scalar_select %p266, %s267, %s268
      %p272 = pneg %p266
      %p273 = scmp.eq.s32.totalorder %s32, 1
      %p274 = por %p272, %p273
      %p275 = scmp.ne.s32.totalorder %s267, %s270
      %p276 = scmp.eq.s32.totalorder %s32, 0
      %p277 = por %p275, %p276
      %p278 = scmp.ne.s32.totalorder %s267, %s270
      %p279 = scmp.eq.s32.totalorder %s37, 1
      %p280 = por %p278, %p279
      %p281 = scmp.ne.s32.totalorder %s270, %s271
      %p282 = scmp.eq.s32.totalorder %s37, 0
      %p283 = por %p281, %p282
      %p284 = scmp.ne.s32.totalorder %s270, %s271
      %p285 = scmp.eq.s32.totalorder %s38, 1
      %p286 = por %p284, %p285
      %p288 = scmp.ne.s32.totalorder %s271, %s287
      %p289 = scmp.eq.s32.totalorder %s38, 0
      %p290 = por %p288, %p289
      %p291 = scmp.le.s32.totalorder 1, %s32
      %p292 = scmp.lt.s32.totalorder %s32, 3
      %p293 = pnand %p291, %p292
      %p294 = pneg %p293
      // Predicated region
      $region9: #{tpu_custom_call.1} parent=5 // pred_check
        _
      $region10: #{tpu_custom_call.1} parent=5 // pred_check_branch
        %296 = sbr.rel (%p293) target = $region12
      $region11: #{tpu_custom_call.1} parent=5 // pred_region
        %s297 = ssub.s32 %s32, 1
        // Predicated region
        $region13: #{tpu_custom_call.1} parent=11 // pred_check
          %p298 = pneg %p105
        $region14: #{tpu_custom_call.1} parent=11 // pred_check_branch
          %300 = sbr.rel (%p298) target = $region16
        $region15: #{tpu_custom_call.1} parent=11 // pred_region
          %302 = vsyncadd [#allocation6], 0
          %s303 = sshll.u32 %s2, 4
          %s304 = int_to_ptr.hbm [resolvable:$true] %s303
          %s305 = sshll.u32 [#allocation7], 4
          %s306 = int_to_ptr.vmem [resolvable:$true] %s305
          %311 = dma.hbm_to_vmem [thread:$0]  %s304, 2048, %s306, [#allocation6], 128, 128, 8
        $region16: #{tpu_custom_call.1} parent=11 // pred_fallthru
          _
        // Predicated region
        $region17: #{tpu_custom_call.1} parent=11 // pred_check
          %p312 = pneg %p126
        $region18: #{tpu_custom_call.1} parent=11 // pred_check_branch
          %314 = sbr.rel (%p312) target = $region20
        $region19: #{tpu_custom_call.1} parent=11 // pred_region
          %316 = vsyncadd [#allocation9], 0
          %s317 = sshll.u32 %s3, 4
          %s318 = int_to_ptr.hbm [resolvable:$true] %s317
          %s319 = sshll.u32 [#allocation8], 4
          %s320 = int_to_ptr.vmem [resolvable:$true] %s319
          %325 = dma.hbm_to_vmem [thread:$0]  %s318, 2048, %s320, [#allocation9], 128, 128, 8
        $region20: #{tpu_custom_call.1} parent=11 // pred_fallthru
          _
        // Predicated region
        $region21: #{tpu_custom_call.1} parent=11 // pred_check
          %p326 = pneg %p147
        $region22: #{tpu_custom_call.1} parent=11 // pred_check_branch
          %328 = sbr.rel (%p326) target = $region24
        $region23: #{tpu_custom_call.1} parent=11 // pred_region
          %330 = vsyncadd [#allocation9], 0
          %s331 = sshll.u32 %s4, 4
          %s332 = int_to_ptr.hbm [resolvable:$true] %s331
          %s333 = sshll.u32 [#allocation10], 4
          %s334 = int_to_ptr.vmem [resolvable:$true] %s333
          %339 = dma.hbm_to_vmem [thread:$0]  %s332, 4096, %s334, [#allocation9], 256, 256, 16
        $region24: #{tpu_custom_call.1} parent=11 // pred_fallthru
          _
        // Predicated region
        $region25: #{tpu_custom_call.1} parent=11 // pred_check
          %p340 = pneg %p168
        $region26: #{tpu_custom_call.1} parent=11 // pred_check_branch
          %342 = sbr.rel (%p340) target = $region28
        $region27: #{tpu_custom_call.1} parent=11 // pred_region
          %344 = vsyncadd [#allocation12], 0
          %s345 = sshll.u32 %s5, 4
          %s346 = int_to_ptr.hbm [resolvable:$true] %s345
          %s347 = sshll.u32 [#allocation11], 4
          %s348 = int_to_ptr.vmem [resolvable:$true] %s347
          %353 = dma.hbm_to_vmem [thread:$0]  %s346, 2048, %s348, [#allocation12], 128, 128, 8
        $region28: #{tpu_custom_call.1} parent=11 // pred_fallthru
          _
        // Predicated region
        $region29: #{tpu_custom_call.1} parent=11 // pred_check
          %p354 = pneg %p189
        $region30: #{tpu_custom_call.1} parent=11 // pred_check_branch
          %356 = sbr.rel (%p354) target = $region32
        $region31: #{tpu_custom_call.1} parent=11 // pred_region
          %358 = vsyncadd [#allocation12], 0
          %s359 = sshll.u32 %s6, 4
          %s360 = int_to_ptr.hbm [resolvable:$true] %s359
          %s361 = sshll.u32 [#allocation13], 4
          %s362 = int_to_ptr.vmem [resolvable:$true] %s361
          %367 = dma.hbm_to_vmem [thread:$0]  %s360, 2048, %s362, [#allocation12], 128, 128, 8
        $region32: #{tpu_custom_call.1} parent=11 // pred_fallthru
          _
        // Predicated region
        $region33: #{tpu_custom_call.1} parent=11 // pred_check
          %p368 = pneg %p210
        $region34: #{tpu_custom_call.1} parent=11 // pred_check_branch
          %370 = sbr.rel (%p368) target = $region36
        $region35: #{tpu_custom_call.1} parent=11 // pred_region
          %372 = vsyncadd [#allocation15], 0
          %s373 = sshll.u32 %s7, 4
          %s374 = int_to_ptr.hbm [resolvable:$true] %s373
          %s375 = sshll.u32 [#allocation14], 4
          %s376 = int_to_ptr.vmem [resolvable:$true] %s375
          %381 = dma.hbm_to_vmem [thread:$0]  %s374, 2048, %s376, [#allocation15], 128, 128, 8
        $region36: #{tpu_custom_call.1} parent=11 // pred_fallthru
          _
        // Predicated region
        $region37: #{tpu_custom_call.1} parent=11 // pred_check
          %p382 = pneg %p231
        $region38: #{tpu_custom_call.1} parent=11 // pred_check_branch
          %384 = sbr.rel (%p382) target = $region40
        $region39: #{tpu_custom_call.1} parent=11 // pred_region
          %386 = vsyncadd [#allocation15], 0
          %s388 = sshll.u32 %s8, 4
          %s389 = int_to_ptr.hbm [resolvable:$true] %s388
          %s390 = sshll.u32 [#allocation16], 4
          %s391 = int_to_ptr.vmem [resolvable:$true] %s390
          %393 = dma.hbm_to_vmem [thread:$0]  %s389, 256, %s391, [#allocation15]
        $region40: #{tpu_custom_call.1} parent=11 // pred_fallthru
          _
      $region12: #{tpu_custom_call.1} parent=5 // pred_fallthru
        _
      %p394 = scmp.lt.s32.totalorder %s32, 2
      // Predicated region
      $region41: #{tpu_custom_call.1} parent=5 // pred_check
        %p395 = pneg %p394
      $region42: #{tpu_custom_call.1} parent=5 // pred_check_branch
        %397 = sbr.rel (%p395) target = $region44
      $region43: #{tpu_custom_call.1} parent=5 // pred_region
        // Predicated region
        $region45: #{tpu_custom_call.1} parent=43 // pred_check
          %p398 = pneg %p52
        $region46: #{tpu_custom_call.1} parent=43 // pred_check_branch
          %400 = sbr.rel (%p398) target = $region48
        $region47: #{tpu_custom_call.1} parent=43 // pred_region
          %s401 = sand.u32 %s42, 1
          %s402 = scalar_lea.sflag [#allocation3], %s401
          %s403 = sand.u32 %s42, 1
          %s404 = smul.addr %s403, 128
          %s405 = scalar_lea.vmem [#allocation2], %s404
          %s406 = smul.u32 16, %s32
          %408 = vsyncadd %s402, 0
          %s409 = smul.addr %s406, 8
          %s410 = scalar_lea.hbm %s0, %s409
          %s411 = sshll.u32 %s410, 4
          %s412 = int_to_ptr.hbm [resolvable:$true] %s411
          %s413 = sshll.u32 %s405, 4
          %s414 = int_to_ptr.vmem [resolvable:$true] %s413
          %419 = dma.hbm_to_vmem [thread:$0]  %s412, 2048, %s414, %s402, 128, 128, 8
        $region48: #{tpu_custom_call.1} parent=43 // pred_fallthru
          _
        // Predicated region
        $region49: #{tpu_custom_call.1} parent=43 // pred_check
          %p420 = pneg %p78
        $region50: #{tpu_custom_call.1} parent=43 // pred_check_branch
          %422 = sbr.rel (%p420) target = $region52
        $region51: #{tpu_custom_call.1} parent=43 // pred_region
          %s423 = sand.u32 %s32, 1
          %s424 = scalar_lea.sflag [#allocation6], %s423
          %s425 = sand.u32 %s68, 1
          %s426 = smul.addr %s425, 128
          %s427 = scalar_lea.vmem [#allocation5], %s426
          %s428 = smul.u32 16, %s32
          %430 = vsyncadd %s424, 0
          %s431 = smul.addr %s428, 8
          %s432 = scalar_lea.hbm %s1, %s431
          %s433 = sshll.u32 %s432, 4
          %s434 = int_to_ptr.hbm [resolvable:$true] %s433
          %s435 = sshll.u32 %s427, 4
          %s436 = int_to_ptr.vmem [resolvable:$true] %s435
          %441 = dma.hbm_to_vmem [thread:$0]  %s434, 2048, %s436, %s424, 128, 128, 8
        $region52: #{tpu_custom_call.1} parent=43 // pred_fallthru
          _
      $region44: #{tpu_custom_call.1} parent=5 // pred_fallthru
        _
      %p442 = scmp.le.s32.totalorder 1, %s32
      %p443 = scmp.lt.s32.totalorder %s32, 3
      %p444 = pnand %p442, %p443
      %p445 = pneg %p444
      // Predicated region
      $region53: #{tpu_custom_call.1} parent=5 // pred_check
        _
      $region54: #{tpu_custom_call.1} parent=5 // pred_check_branch
        %447 = sbr.rel (%p444) target = $region56
      $region55: #{tpu_custom_call.1} parent=5 // pred_region
        %s448 = ssub.s32 %s32, 1
        %s449 = sand.u32 %s45, 1
        %s450 = scalar_lea.sflag [#allocation3], %s449
        %s451 = sand.u32 %s45, 1
        %s452 = smul.addr %s451, 128
        %s453 = scalar_lea.vmem [#allocation2], %s452
        // Predicated region
        $region57: #{tpu_custom_call.1} parent=55 // pred_check
          %p454 = pneg %p58
        $region58: #{tpu_custom_call.1} parent=55 // pred_check_branch
          %456 = sbr.rel (%p454) target = $region60
        $region59: #{tpu_custom_call.1} parent=55 // pred_region
          %458 = dma.done %s450, 2048
        $region60: #{tpu_custom_call.1} parent=55 // pred_fallthru
          _
        %s459 = sand.u32 %s37, 1
        %s460 = scalar_lea.sflag [#allocation6], %s459
        %s461 = sand.u32 %s71, 1
        %s462 = smul.addr %s461, 128
        %s463 = scalar_lea.vmem [#allocation5], %s462
        // Predicated region
        $region61: #{tpu_custom_call.1} parent=55 // pred_check
          %p464 = pneg %p84
        $region62: #{tpu_custom_call.1} parent=55 // pred_check_branch
          %466 = sbr.rel (%p464) target = $region64
        $region63: #{tpu_custom_call.1} parent=55 // pred_region
          %468 = dma.done %s460, 2048
        $region64: #{tpu_custom_call.1} parent=55 // pred_fallthru
          _
        // Predicated region
        $region65: #{tpu_custom_call.1} parent=55 // pred_check
          %p469 = pneg %p105
        $region66: #{tpu_custom_call.1} parent=55 // pred_check_branch
          %471 = sbr.rel (%p469) target = $region68
        $region67: #{tpu_custom_call.1} parent=55 // pred_region
          %473 = dma.done [#allocation6], 2048
        $region68: #{tpu_custom_call.1} parent=55 // pred_fallthru
          _
        // Predicated region
        $region69: #{tpu_custom_call.1} parent=55 // pred_check
          %p474 = pneg %p126
        $region70: #{tpu_custom_call.1} parent=55 // pred_check_branch
          %476 = sbr.rel (%p474) target = $region72
        $region71: #{tpu_custom_call.1} parent=55 // pred_region
          %478 = dma.done [#allocation9], 2048
        $region72: #{tpu_custom_call.1} parent=55 // pred_fallthru
          _
        // Predicated region
        $region73: #{tpu_custom_call.1} parent=55 // pred_check
          %p479 = pneg %p147
        $region74: #{tpu_custom_call.1} parent=55 // pred_check_branch
          %481 = sbr.rel (%p479) target = $region76
        $region75: #{tpu_custom_call.1} parent=55 // pred_region
          %483 = dma.done [#allocation9], 4096
        $region76: #{tpu_custom_call.1} parent=55 // pred_fallthru
          _
        // Predicated region
        $region77: #{tpu_custom_call.1} parent=55 // pred_check
          %p484 = pneg %p168
        $region78: #{tpu_custom_call.1} parent=55 // pred_check_branch
          %486 = sbr.rel (%p484) target = $region80
        $region79: #{tpu_custom_call.1} parent=55 // pred_region
          %488 = dma.done [#allocation12], 2048
        $region80: #{tpu_custom_call.1} parent=55 // pred_fallthru
          _
        // Predicated region
        $region81: #{tpu_custom_call.1} parent=55 // pred_check
          %p489 = pneg %p189
        $region82: #{tpu_custom_call.1} parent=55 // pred_check_branch
          %491 = sbr.rel (%p489) target = $region84
        $region83: #{tpu_custom_call.1} parent=55 // pred_region
          %493 = dma.done [#allocation12], 2048
        $region84: #{tpu_custom_call.1} parent=55 // pred_fallthru
          _
        // Predicated region
        $region85: #{tpu_custom_call.1} parent=55 // pred_check
          %p494 = pneg %p210
        $region86: #{tpu_custom_call.1} parent=55 // pred_check_branch
          %496 = sbr.rel (%p494) target = $region88
        $region87: #{tpu_custom_call.1} parent=55 // pred_region
          %498 = dma.done [#allocation15], 2048
        $region88: #{tpu_custom_call.1} parent=55 // pred_fallthru
          _
        // Predicated region
        $region89: #{tpu_custom_call.1} parent=55 // pred_check
          %p499 = pneg %p231
        $region90: #{tpu_custom_call.1} parent=55 // pred_check_branch
          %501 = sbr.rel (%p499) target = $region92
        $region91: #{tpu_custom_call.1} parent=55 // pred_region
          %503 = dma.done [#allocation15], 256
        $region92: #{tpu_custom_call.1} parent=55 // pred_fallthru
          _
        %s504 = sand.u32 %s45, 1
        %s505 = scalar_lea.sflag [#allocation3], %s504
        %s506 = sand.u32 %s45, 1
        %s507 = smul.addr %s506, 128
        %s508 = scalar_lea.vmem [#allocation2], %s507
        %p509 = pneg %p58
        %p510 = pneg %p55
        %s511 = sand.u32 %s37, 1
        %s512 = scalar_lea.sflag [#allocation6], %s511
        %s513 = sand.u32 %s71, 1
        %s514 = smul.addr %s513, 128
        %s515 = scalar_lea.vmem [#allocation5], %s514
        %p516 = pneg %p84
        %p517 = pneg %p81
        %p518 = pneg %p105
        %p519 = pneg %p102
        %p520 = pneg %p126
        %p521 = pneg %p123
        %p522 = pneg %p147
        %p523 = pneg %p144
        %p524 = pneg %p168
        %p525 = pneg %p165
        %p526 = pneg %p189
        %p527 = pneg %p186
        %p528 = pneg %p210
        %p529 = pneg %p207
        %p530 = pneg %p231
        %p531 = pneg %p228
        %p532 = pneg %p257
        %p533 = pneg %p254
        %s534 = sand.u32 %s244, 1
        %s535 = scalar_lea.sflag [#allocation4], %s534
        %s536 = sand.u32 %s244, 1
        %s537 = smul.addr %s536, 128
        %s538 = scalar_lea.vmem [#allocation17], %s537
        %p539 = pneg %p283
        %p540 = pneg %p280
        %s541 = sand.u32 %s270, 1
        %s542 = scalar_lea.sflag [#allocation19], %s541
        %s543 = sand.u32 %s270, 1
        %s544 = smul.addr %s543, 128
        %s545 = scalar_lea.vmem [#allocation18], %s544
        %s546 = smul.u32 16, %s37
        %s547 = smul.u32 16, %s37
        %s548 = smul.u32 16, %s37
        %s549 = smul.u32 16, %s37
        %v550 = vld [vmem:[%s453] sm:$0xff]
        %v551 = vld [vmem:[%s453 + $0x8] sm:$0xff]
        %v552 = vld [vmem:[%s453 + $0x10] sm:$0xff]
        %v553 = vld [vmem:[%s453 + $0x18] sm:$0xff]
        %v554 = vld [vmem:[%s453 + $0x20] sm:$0xff]
        %v555 = vld [vmem:[%s453 + $0x28] sm:$0xff]
        %v556 = vld [vmem:[%s453 + $0x30] sm:$0xff]
        %v557 = vld [vmem:[%s453 + $0x38] sm:$0xff]
        %v558 = vld [vmem:[%s453 + $0x40] sm:$0xff]
        %v559 = vld [vmem:[%s453 + $0x48] sm:$0xff]
        %v560 = vld [vmem:[%s453 + $0x50] sm:$0xff]
        %v561 = vld [vmem:[%s453 + $0x58] sm:$0xff]
        %v562 = vld [vmem:[%s453 + $0x60] sm:$0xff]
        %v563 = vld [vmem:[%s453 + $0x68] sm:$0xff]
        %v564 = vld [vmem:[%s453 + $0x70] sm:$0xff]
        %v565 = vld [vmem:[%s453 + $0x78] sm:$0xff]
        %v566 = vld [vmem:[#allocation7] sm:$0xff]
        %v567 = vld [vmem:[#allocation7 + $0x8] sm:$0xff]
        %v568 = vld [vmem:[#allocation7 + $0x10] sm:$0xff]
        %v569 = vld [vmem:[#allocation7 + $0x18] sm:$0xff]
        %v570 = vld [vmem:[#allocation7 + $0x20] sm:$0xff]
        %v571 = vld [vmem:[#allocation7 + $0x28] sm:$0xff]
        %v572 = vld [vmem:[#allocation7 + $0x30] sm:$0xff]
        %v573 = vld [vmem:[#allocation7 + $0x38] sm:$0xff]
        %v574 = vld [vmem:[#allocation7 + $0x40] sm:$0xff]
        %v575 = vld [vmem:[#allocation7 + $0x48] sm:$0xff]
        %v576 = vld [vmem:[#allocation7 + $0x50] sm:$0xff]
        %v577 = vld [vmem:[#allocation7 + $0x58] sm:$0xff]
        %v578 = vld [vmem:[#allocation7 + $0x60] sm:$0xff]
        %v579 = vld [vmem:[#allocation7 + $0x68] sm:$0xff]
        %v580 = vld [vmem:[#allocation7 + $0x70] sm:$0xff]
        %v581 = vld [vmem:[#allocation7 + $0x78] sm:$0xff]
        %v582 = vld [vmem:[#allocation16] ss:$0 sm:$0xff]
        %583 = vmatpush.msra.mxu0 %v581
        %584 = vmatpush.msra.mxu0 %v580
        %585 = vmatpush.msra.mxu0 %v579
        %586 = vmatpush.msra.mxu0 %v578
        %587 = vmatpush.msra.mxu0 %v577
        %588 = vmatpush.msra.mxu0 %v576
        %589 = vmatpush.msra.mxu0 %v575
        %590 = vmatpush.msra.mxu0 %v574
        %591 = vmatpush.msra.mxu0 %v573
        %592 = vmatpush.msra.mxu0 %v572
        %593 = vmatpush.msra.mxu0 %v571
        %594 = vmatpush.msra.mxu0 %v570
        %595 = vmatpush.msra.mxu0 %v569
        %596 = vmatpush.msra.mxu0 %v568
        %597 = vmatpush.msra.mxu0 %v567
        %598 = vmatpush.msra.mxu0 %v566
        %599 = vmatmul.f32.gmra.mxu0 %v550
        %v600 = vpop.f32.mrf.mxu0
        %v601 = vadd.f32 %v582, %v600
        %602 = vmatmul.f32.gmra.mxu0 %v551
        %v603 = vpop.f32.mrf.mxu0
        %v604 = vadd.f32 %v582, %v603
        %605 = vmatmul.f32.gmra.mxu0 %v552
        %v606 = vpop.f32.mrf.mxu0
        %v607 = vadd.f32 %v582, %v606
        %608 = vmatmul.f32.gmra.mxu0 %v553
        %v609 = vpop.f32.mrf.mxu0
        %v610 = vadd.f32 %v582, %v609
        %611 = vmatmul.f32.gmra.mxu0 %v554
        %v612 = vpop.f32.mrf.mxu0
        %v613 = vadd.f32 %v582, %v612
        %614 = vmatmul.f32.gmra.mxu0 %v555
        %v615 = vpop.f32.mrf.mxu0
        %v616 = vadd.f32 %v582, %v615
        %617 = vmatmul.f32.gmra.mxu0 %v556
        %v618 = vpop.f32.mrf.mxu0
        %v619 = vadd.f32 %v582, %v618
        %620 = vmatmul.f32.gmra.mxu0 %v557
        %v621 = vpop.f32.mrf.mxu0
        %v622 = vadd.f32 %v582, %v621
        %623 = vmatmul.f32.gmra.mxu0 %v558
        %v624 = vpop.f32.mrf.mxu0
        %v625 = vadd.f32 %v582, %v624
        %626 = vmatmul.f32.gmra.mxu0 %v559
        %v627 = vpop.f32.mrf.mxu0
        %v628 = vadd.f32 %v582, %v627
        %629 = vmatmul.f32.gmra.mxu0 %v560
        %v630 = vpop.f32.mrf.mxu0
        %v631 = vadd.f32 %v582, %v630
        %632 = vmatmul.f32.gmra.mxu0 %v561
        %v633 = vpop.f32.mrf.mxu0
        %v634 = vadd.f32 %v582, %v633
        %635 = vmatmul.f32.gmra.mxu0 %v562
        %v636 = vpop.f32.mrf.mxu0
        %v637 = vadd.f32 %v582, %v636
        %638 = vmatmul.f32.gmra.mxu0 %v563
        %v639 = vpop.f32.mrf.mxu0
        %v640 = vadd.f32 %v582, %v639
        %641 = vmatmul.f32.gmra.mxu0 %v564
        %v642 = vpop.f32.mrf.mxu0
        %v643 = vadd.f32 %v582, %v642
        %644 = vmatmul.f32.gmra.mxu0 %v565
        %v645 = vpop.f32.mrf.mxu0
        %v646 = vadd.f32 %v582, %v645
        %647 = vdwg.mxu0
        %v648 = vmax.f32 %v601, 0.0
        %v649 = vmax.f32 %v604, 0.0
        %v650 = vmax.f32 %v607, 0.0
        %v651 = vmax.f32 %v610, 0.0
        %v652 = vmax.f32 %v613, 0.0
        %v653 = vmax.f32 %v616, 0.0
        %v654 = vmax.f32 %v619, 0.0
        %v655 = vmax.f32 %v622, 0.0
        %v656 = vmax.f32 %v625, 0.0
        %v657 = vmax.f32 %v628, 0.0
        %v658 = vmax.f32 %v631, 0.0
        %v659 = vmax.f32 %v634, 0.0
        %v660 = vmax.f32 %v637, 0.0
        %v661 = vmax.f32 %v640, 0.0
        %v662 = vmax.f32 %v643, 0.0
        %v663 = vmax.f32 %v646, 0.0
        %v664 = vld [vmem:[#allocation8] sm:$0xff]
        %v665 = vld [vmem:[#allocation8 + $0x8] sm:$0xff]
        %v666 = vld [vmem:[#allocation8 + $0x10] sm:$0xff]
        %v667 = vld [vmem:[#allocation8 + $0x18] sm:$0xff]
        %v668 = vld [vmem:[#allocation8 + $0x20] sm:$0xff]
        %v669 = vld [vmem:[#allocation8 + $0x28] sm:$0xff]
        %v670 = vld [vmem:[#allocation8 + $0x30] sm:$0xff]
        %v671 = vld [vmem:[#allocation8 + $0x38] sm:$0xff]
        %v672 = vld [vmem:[#allocation8 + $0x40] sm:$0xff]
        %v673 = vld [vmem:[#allocation8 + $0x48] sm:$0xff]
        %v674 = vld [vmem:[#allocation8 + $0x50] sm:$0xff]
        %v675 = vld [vmem:[#allocation8 + $0x58] sm:$0xff]
        %v676 = vld [vmem:[#allocation8 + $0x60] sm:$0xff]
        %v677 = vld [vmem:[#allocation8 + $0x68] sm:$0xff]
        %v678 = vld [vmem:[#allocation8 + $0x70] sm:$0xff]
        %v679 = vld [vmem:[#allocation8 + $0x78] sm:$0xff]
        %v680 = vld [vmem:[#allocation16 + $0x1] ss:$0 sm:$0xff]
        %681 = vmatpush.msra.mxu0 %v679
        %682 = vmatpush.msra.mxu0 %v678
        %683 = vmatpush.msra.mxu0 %v677
        %684 = vmatpush.msra.mxu0 %v676
        %685 = vmatpush.msra.mxu0 %v675
        %686 = vmatpush.msra.mxu0 %v674
        %687 = vmatpush.msra.mxu0 %v673
        %688 = vmatpush.msra.mxu0 %v672
        %689 = vmatpush.msra.mxu0 %v671
        %690 = vmatpush.msra.mxu0 %v670
        %691 = vmatpush.msra.mxu0 %v669
        %692 = vmatpush.msra.mxu0 %v668
        %693 = vmatpush.msra.mxu0 %v667
        %694 = vmatpush.msra.mxu0 %v666
        %695 = vmatpush.msra.mxu0 %v665
        %696 = vmatpush.msra.mxu0 %v664
        %697 = vmatmul.f32.gmra.mxu0 %v648
        %v698 = vpop.f32.mrf.mxu0
        %v699 = vadd.f32 %v680, %v698
        %700 = vmatmul.f32.gmra.mxu0 %v649
        %v701 = vpop.f32.mrf.mxu0
        %v702 = vadd.f32 %v680, %v701
        %703 = vmatmul.f32.gmra.mxu0 %v650
        %v704 = vpop.f32.mrf.mxu0
        %v705 = vadd.f32 %v680, %v704
        %706 = vmatmul.f32.gmra.mxu0 %v651
        %v707 = vpop.f32.mrf.mxu0
        %v708 = vadd.f32 %v680, %v707
        %709 = vmatmul.f32.gmra.mxu0 %v652
        %v710 = vpop.f32.mrf.mxu0
        %v711 = vadd.f32 %v680, %v710
        %712 = vmatmul.f32.gmra.mxu0 %v653
        %v713 = vpop.f32.mrf.mxu0
        %v714 = vadd.f32 %v680, %v713
        %715 = vmatmul.f32.gmra.mxu0 %v654
        %v716 = vpop.f32.mrf.mxu0
        %v717 = vadd.f32 %v680, %v716
        %718 = vmatmul.f32.gmra.mxu0 %v655
        %v719 = vpop.f32.mrf.mxu0
        %v720 = vadd.f32 %v680, %v719
        %721 = vmatmul.f32.gmra.mxu0 %v656
        %v722 = vpop.f32.mrf.mxu0
        %v723 = vadd.f32 %v680, %v722
        %724 = vmatmul.f32.gmra.mxu0 %v657
        %v725 = vpop.f32.mrf.mxu0
        %v726 = vadd.f32 %v680, %v725
        %727 = vmatmul.f32.gmra.mxu0 %v658
        %v728 = vpop.f32.mrf.mxu0
        %v729 = vadd.f32 %v680, %v728
        %730 = vmatmul.f32.gmra.mxu0 %v659
        %v731 = vpop.f32.mrf.mxu0
        %v732 = vadd.f32 %v680, %v731
        %733 = vmatmul.f32.gmra.mxu0 %v660
        %v734 = vpop.f32.mrf.mxu0
        %v735 = vadd.f32 %v680, %v734
        %736 = vmatmul.f32.gmra.mxu0 %v661
        %v737 = vpop.f32.mrf.mxu0
        %v738 = vadd.f32 %v680, %v737
        %739 = vmatmul.f32.gmra.mxu0 %v662
        %v740 = vpop.f32.mrf.mxu0
        %v741 = vadd.f32 %v680, %v740
        %742 = vmatmul.f32.gmra.mxu0 %v663
        %v743 = vpop.f32.mrf.mxu0
        %v744 = vadd.f32 %v680, %v743
        %745 = vdwg.mxu0
        %v746 = vmax.f32 %v699, 0.0
        %v747 = vmax.f32 %v702, 0.0
        %v748 = vmax.f32 %v705, 0.0
        %v749 = vmax.f32 %v708, 0.0
        %v750 = vmax.f32 %v711, 0.0
        %v751 = vmax.f32 %v714, 0.0
        %v752 = vmax.f32 %v717, 0.0
        %v753 = vmax.f32 %v720, 0.0
        %v754 = vmax.f32 %v723, 0.0
        %v755 = vmax.f32 %v726, 0.0
        %v756 = vmax.f32 %v729, 0.0
        %v757 = vmax.f32 %v732, 0.0
        %v758 = vmax.f32 %v735, 0.0
        %v759 = vmax.f32 %v738, 0.0
        %v760 = vmax.f32 %v741, 0.0
        %v761 = vmax.f32 %v744, 0.0
        %v762 = vld [vmem:[#allocation10] sm:$0xff]
        %v763 = vld [vmem:[#allocation10 + $0x8] sm:$0xff]
        %v764 = vld [vmem:[#allocation10 + $0x10] sm:$0xff]
        %v765 = vld [vmem:[#allocation10 + $0x18] sm:$0xff]
        %v766 = vld [vmem:[#allocation10 + $0x20] sm:$0xff]
        %v767 = vld [vmem:[#allocation10 + $0x28] sm:$0xff]
        %v768 = vld [vmem:[#allocation10 + $0x30] sm:$0xff]
        %v769 = vld [vmem:[#allocation10 + $0x38] sm:$0xff]
        %v770 = vld [vmem:[#allocation10 + $0x40] sm:$0xff]
        %v771 = vld [vmem:[#allocation10 + $0x48] sm:$0xff]
        %v772 = vld [vmem:[#allocation10 + $0x50] sm:$0xff]
        %v773 = vld [vmem:[#allocation10 + $0x58] sm:$0xff]
        %v774 = vld [vmem:[#allocation10 + $0x60] sm:$0xff]
        %v775 = vld [vmem:[#allocation10 + $0x68] sm:$0xff]
        %v776 = vld [vmem:[#allocation10 + $0x70] sm:$0xff]
        %v777 = vld [vmem:[#allocation10 + $0x78] sm:$0xff]
        %v778 = vld [vmem:[#allocation10 + $0x80] sm:$0xff]
        %v779 = vld [vmem:[#allocation10 + $0x88] sm:$0xff]
        %v780 = vld [vmem:[#allocation10 + $0x90] sm:$0xff]
        %v781 = vld [vmem:[#allocation10 + $0x98] sm:$0xff]
        %v782 = vld [vmem:[#allocation10 + $0xa0] sm:$0xff]
        %v783 = vld [vmem:[#allocation10 + $0xa8] sm:$0xff]
        %v784 = vld [vmem:[#allocation10 + $0xb0] sm:$0xff]
        %v785 = vld [vmem:[#allocation10 + $0xb8] sm:$0xff]
        %v786 = vld [vmem:[#allocation10 + $0xc0] sm:$0xff]
        %v787 = vld [vmem:[#allocation10 + $0xc8] sm:$0xff]
        %v788 = vld [vmem:[#allocation10 + $0xd0] sm:$0xff]
        %v789 = vld [vmem:[#allocation10 + $0xd8] sm:$0xff]
        %v790 = vld [vmem:[#allocation10 + $0xe0] sm:$0xff]
        %v791 = vld [vmem:[#allocation10 + $0xe8] sm:$0xff]
        %v792 = vld [vmem:[#allocation10 + $0xf0] sm:$0xff]
        %v793 = vld [vmem:[#allocation10 + $0xf8] sm:$0xff]
        %s794 = scalar_lea.vmem [#allocation16], 2
        %v795 = vld [vmem:[%s794] ss:$8 sm:$0x3]
        %v797 = vperm.slane %v795, 0
        %v798 = vperm.slane %v795, 1
        %801 = vmatpush.msra.mxu0 %v792
        %802 = vmatpush.msra.mxu0 %v790
        %803 = vmatpush.msra.mxu0 %v788
        %804 = vmatpush.msra.mxu0 %v786
        %805 = vmatpush.msra.mxu0 %v784
        %806 = vmatpush.msra.mxu0 %v782
        %807 = vmatpush.msra.mxu0 %v780
        %808 = vmatpush.msra.mxu0 %v778
        %809 = vmatpush.msra.mxu0 %v776
        %810 = vmatpush.msra.mxu0 %v774
        %811 = vmatpush.msra.mxu0 %v772
        %812 = vmatpush.msra.mxu0 %v770
        %813 = vmatpush.msra.mxu0 %v768
        %814 = vmatpush.msra.mxu0 %v766
        %815 = vmatpush.msra.mxu0 %v764
        %816 = vmatpush.msra.mxu0 %v762
        %817 = vmatmul.f32.gmra.mxu0 %v746
        %v818 = vpop.f32.mrf.mxu0
        %v819 = vadd.f32 %v797, %v818
        %820 = vmatmul.f32.gmra.mxu0 %v747
        %v821 = vpop.f32.mrf.mxu0
        %v822 = vadd.f32 %v797, %v821
        %823 = vmatmul.f32.gmra.mxu0 %v748
        %v824 = vpop.f32.mrf.mxu0
        %v825 = vadd.f32 %v797, %v824
        %826 = vmatmul.f32.gmra.mxu0 %v749
        %v827 = vpop.f32.mrf.mxu0
        %v828 = vadd.f32 %v797, %v827
        %829 = vmatmul.f32.gmra.mxu0 %v750
        %v830 = vpop.f32.mrf.mxu0
        %v831 = vadd.f32 %v797, %v830
        %832 = vmatmul.f32.gmra.mxu0 %v751
        %v833 = vpop.f32.mrf.mxu0
        %v834 = vadd.f32 %v797, %v833
        %835 = vmatmul.f32.gmra.mxu0 %v752
        %v836 = vpop.f32.mrf.mxu0
        %v837 = vadd.f32 %v797, %v836
        %838 = vmatmul.f32.gmra.mxu0 %v753
        %v839 = vpop.f32.mrf.mxu0
        %v840 = vadd.f32 %v797, %v839
        %841 = vmatmul.f32.gmra.mxu0 %v754
        %v842 = vpop.f32.mrf.mxu0
        %v843 = vadd.f32 %v797, %v842
        %844 = vmatmul.f32.gmra.mxu0 %v755
        %v845 = vpop.f32.mrf.mxu0
        %v846 = vadd.f32 %v797, %v845
        %847 = vmatmul.f32.gmra.mxu0 %v756
        %v848 = vpop.f32.mrf.mxu0
        %v849 = vadd.f32 %v797, %v848
        %850 = vmatmul.f32.gmra.mxu0 %v757
        %v851 = vpop.f32.mrf.mxu0
        %v852 = vadd.f32 %v797, %v851
        %853 = vmatmul.f32.gmra.mxu0 %v758
        %v854 = vpop.f32.mrf.mxu0
        %v855 = vadd.f32 %v797, %v854
        %856 = vmatmul.f32.gmra.mxu0 %v759
        %v857 = vpop.f32.mrf.mxu0
        %v858 = vadd.f32 %v797, %v857
        %859 = vmatmul.f32.gmra.mxu0 %v760
        %v860 = vpop.f32.mrf.mxu0
        %v861 = vadd.f32 %v797, %v860
        %862 = vmatmul.f32.gmra.mxu0 %v761
        %v863 = vpop.f32.mrf.mxu0
        %v864 = vadd.f32 %v797, %v863
        %865 = vdwg.mxu0
        %866 = vmatpush.msra.mxu0 %v793
        %867 = vmatpush.msra.mxu0 %v791
        %868 = vmatpush.msra.mxu0 %v789
        %869 = vmatpush.msra.mxu0 %v787
        %870 = vmatpush.msra.mxu0 %v785
        %871 = vmatpush.msra.mxu0 %v783
        %872 = vmatpush.msra.mxu0 %v781
        %873 = vmatpush.msra.mxu0 %v779
        %874 = vmatpush.msra.mxu0 %v777
        %875 = vmatpush.msra.mxu0 %v775
        %876 = vmatpush.msra.mxu0 %v773
        %877 = vmatpush.msra.mxu0 %v771
        %878 = vmatpush.msra.mxu0 %v769
        %879 = vmatpush.msra.mxu0 %v767
        %880 = vmatpush.msra.mxu0 %v765
        %881 = vmatpush.msra.mxu0 %v763
        %882 = vmatmul.f32.gmra.mxu0 %v746
        %v883 = vpop.f32.mrf.mxu0
        %v884 = vadd.f32 %v798, %v883
        %885 = vmatmul.f32.gmra.mxu0 %v747
        %v886 = vpop.f32.mrf.mxu0
        %v887 = vadd.f32 %v798, %v886
        %888 = vmatmul.f32.gmra.mxu0 %v748
        %v889 = vpop.f32.mrf.mxu0
        %v890 = vadd.f32 %v798, %v889
        %891 = vmatmul.f32.gmra.mxu0 %v749
        %v892 = vpop.f32.mrf.mxu0
        %v893 = vadd.f32 %v798, %v892
        %894 = vmatmul.f32.gmra.mxu0 %v750
        %v895 = vpop.f32.mrf.mxu0
        %v896 = vadd.f32 %v798, %v895
        %897 = vmatmul.f32.gmra.mxu0 %v751
        %v898 = vpop.f32.mrf.mxu0
        %v899 = vadd.f32 %v798, %v898
        %900 = vmatmul.f32.gmra.mxu0 %v752
        %v901 = vpop.f32.mrf.mxu0
        %v902 = vadd.f32 %v798, %v901
        %903 = vmatmul.f32.gmra.mxu0 %v753
        %v904 = vpop.f32.mrf.mxu0
        %v905 = vadd.f32 %v798, %v904
        %906 = vmatmul.f32.gmra.mxu0 %v754
        %v907 = vpop.f32.mrf.mxu0
        %v908 = vadd.f32 %v798, %v907
        %909 = vmatmul.f32.gmra.mxu0 %v755
        %v910 = vpop.f32.mrf.mxu0
        %v911 = vadd.f32 %v798, %v910
        %912 = vmatmul.f32.gmra.mxu0 %v756
        %v913 = vpop.f32.mrf.mxu0
        %v914 = vadd.f32 %v798, %v913
        %915 = vmatmul.f32.gmra.mxu0 %v757
        %v916 = vpop.f32.mrf.mxu0
        %v917 = vadd.f32 %v798, %v916
        %918 = vmatmul.f32.gmra.mxu0 %v758
        %v919 = vpop.f32.mrf.mxu0
        %v920 = vadd.f32 %v798, %v919
        %921 = vmatmul.f32.gmra.mxu0 %v759
        %v922 = vpop.f32.mrf.mxu0
        %v923 = vadd.f32 %v798, %v922
        %924 = vmatmul.f32.gmra.mxu0 %v760
        %v925 = vpop.f32.mrf.mxu0
        %v926 = vadd.f32 %v798, %v925
        %927 = vmatmul.f32.gmra.mxu0 %v761
        %v928 = vpop.f32.mrf.mxu0
        %v929 = vadd.f32 %v798, %v928
        %930 = vdwg.mxu0
        %v931 = vld [vmem:[%s463] sm:$0xff]
        %v932 = vld [vmem:[%s463 + $0x8] sm:$0xff]
        %v933 = vld [vmem:[%s463 + $0x10] sm:$0xff]
        %v934 = vld [vmem:[%s463 + $0x18] sm:$0xff]
        %v935 = vld [vmem:[%s463 + $0x20] sm:$0xff]
        %v936 = vld [vmem:[%s463 + $0x28] sm:$0xff]
        %v937 = vld [vmem:[%s463 + $0x30] sm:$0xff]
        %v938 = vld [vmem:[%s463 + $0x38] sm:$0xff]
        %v939 = vld [vmem:[%s463 + $0x40] sm:$0xff]
        %v940 = vld [vmem:[%s463 + $0x48] sm:$0xff]
        %v941 = vld [vmem:[%s463 + $0x50] sm:$0xff]
        %v942 = vld [vmem:[%s463 + $0x58] sm:$0xff]
        %v943 = vld [vmem:[%s463 + $0x60] sm:$0xff]
        %v944 = vld [vmem:[%s463 + $0x68] sm:$0xff]
        %v945 = vld [vmem:[%s463 + $0x70] sm:$0xff]
        %v946 = vld [vmem:[%s463 + $0x78] sm:$0xff]
        %v947 = vmul.f32 %v884, 0.5
        %v948 = vmul.f32 %v887, 0.5
        %v949 = vmul.f32 %v890, 0.5
        %v950 = vmul.f32 %v893, 0.5
        %v951 = vmul.f32 %v896, 0.5
        %v952 = vmul.f32 %v899, 0.5
        %v953 = vmul.f32 %v902, 0.5
        %v954 = vmul.f32 %v905, 0.5
        %v955 = vmul.f32 %v908, 0.5
        %v956 = vmul.f32 %v911, 0.5
        %v957 = vmul.f32 %v914, 0.5
        %v958 = vmul.f32 %v917, 0.5
        %v959 = vmul.f32 %v920, 0.5
        %v960 = vmul.f32 %v923, 0.5
        %v961 = vmul.f32 %v926, 0.5
        %v962 = vmul.f32 %v929, 0.5
        %v963 = vmul.f32 %v947, 1.442695
        %v964 = vpow.pop %v963
        %v965 = vmul.f32 %v948, 1.442695
        %v966 = vpow.pop %v965
        %v967 = vmul.f32 %v949, 1.442695
        %v968 = vpow.pop %v967
        %v969 = vmul.f32 %v950, 1.442695
        %v970 = vpow.pop %v969
        %v971 = vmul.f32 %v951, 1.442695
        %v972 = vpow.pop %v971
        %v973 = vmul.f32 %v952, 1.442695
        %v974 = vpow.pop %v973
        %v975 = vmul.f32 %v953, 1.442695
        %v976 = vpow.pop %v975
        %v977 = vmul.f32 %v954, 1.442695
        %v978 = vpow.pop %v977
        %v979 = vmul.f32 %v955, 1.442695
        %v980 = vpow.pop %v979
        %v981 = vmul.f32 %v956, 1.442695
        %v982 = vpow.pop %v981
        %v983 = vmul.f32 %v957, 1.442695
        %v984 = vpow.pop %v983
        %v985 = vmul.f32 %v958, 1.442695
        %v986 = vpow.pop %v985
        %v987 = vmul.f32 %v959, 1.442695
        %v988 = vpow.pop %v987
        %v989 = vmul.f32 %v960, 1.442695
        %v990 = vpow.pop %v989
        %v991 = vmul.f32 %v961, 1.442695
        %v992 = vpow.pop %v991
        %v993 = vmul.f32 %v962, 1.442695
        %v994 = vpow.pop %v993
        %v995 = vmul.f32 %v931, %v964
        %v996 = vmul.f32 %v932, %v966
        %v997 = vmul.f32 %v933, %v968
        %v998 = vmul.f32 %v934, %v970
        %v999 = vmul.f32 %v935, %v972
        %v1000 = vmul.f32 %v936, %v974
        %v1001 = vmul.f32 %v937, %v976
        %v1002 = vmul.f32 %v938, %v978
        %v1003 = vmul.f32 %v939, %v980
        %v1004 = vmul.f32 %v940, %v982
        %v1005 = vmul.f32 %v941, %v984
        %v1006 = vmul.f32 %v942, %v986
        %v1007 = vmul.f32 %v943, %v988
        %v1008 = vmul.f32 %v944, %v990
        %v1009 = vmul.f32 %v945, %v992
        %v1010 = vmul.f32 %v946, %v994
        %v1011 = vadd.f32 %v995, %v819
        %v1012 = vadd.f32 %v996, %v822
        %v1013 = vadd.f32 %v997, %v825
        %v1014 = vadd.f32 %v998, %v828
        %v1015 = vadd.f32 %v999, %v831
        %v1016 = vadd.f32 %v1000, %v834
        %v1017 = vadd.f32 %v1001, %v837
        %v1018 = vadd.f32 %v1002, %v840
        %v1019 = vadd.f32 %v1003, %v843
        %v1020 = vadd.f32 %v1004, %v846
        %v1021 = vadd.f32 %v1005, %v849
        %v1022 = vadd.f32 %v1006, %v852
        %v1023 = vadd.f32 %v1007, %v855
        %v1024 = vadd.f32 %v1008, %v858
        %v1025 = vadd.f32 %v1009, %v861
        %v1026 = vadd.f32 %v1010, %v864
        %1027 = vst [vmem:[%s538] sm:$0xff] %v1011
        %1028 = vst [vmem:[%s538 + $0x8] sm:$0xff] %v1012
        %1029 = vst [vmem:[%s538 + $0x10] sm:$0xff] %v1013
        %1030 = vst [vmem:[%s538 + $0x18] sm:$0xff] %v1014
        %1031 = vst [vmem:[%s538 + $0x20] sm:$0xff] %v1015
        %1032 = vst [vmem:[%s538 + $0x28] sm:$0xff] %v1016
        %1033 = vst [vmem:[%s538 + $0x30] sm:$0xff] %v1017
        %1034 = vst [vmem:[%s538 + $0x38] sm:$0xff] %v1018
        %1035 = vst [vmem:[%s538 + $0x40] sm:$0xff] %v1019
        %1036 = vst [vmem:[%s538 + $0x48] sm:$0xff] %v1020
        %1037 = vst [vmem:[%s538 + $0x50] sm:$0xff] %v1021
        %1038 = vst [vmem:[%s538 + $0x58] sm:$0xff] %v1022
        %1039 = vst [vmem:[%s538 + $0x60] sm:$0xff] %v1023
        %1040 = vst [vmem:[%s538 + $0x68] sm:$0xff] %v1024
        %1041 = vst [vmem:[%s538 + $0x70] sm:$0xff] %v1025
        %1042 = vst [vmem:[%s538 + $0x78] sm:$0xff] %v1026
        %v1043 = vld [vmem:[#allocation11] sm:$0xff]
        %v1044 = vld [vmem:[#allocation11 + $0x8] sm:$0xff]
        %v1045 = vld [vmem:[#allocation11 + $0x10] sm:$0xff]
        %v1046 = vld [vmem:[#allocation11 + $0x18] sm:$0xff]
        %v1047 = vld [vmem:[#allocation11 + $0x20] sm:$0xff]
        %v1048 = vld [vmem:[#allocation11 + $0x28] sm:$0xff]
        %v1049 = vld [vmem:[#allocation11 + $0x30] sm:$0xff]
        %v1050 = vld [vmem:[#allocation11 + $0x38] sm:$0xff]
        %v1051 = vld [vmem:[#allocation11 + $0x40] sm:$0xff]
        %v1052 = vld [vmem:[#allocation11 + $0x48] sm:$0xff]
        %v1053 = vld [vmem:[#allocation11 + $0x50] sm:$0xff]
        %v1054 = vld [vmem:[#allocation11 + $0x58] sm:$0xff]
        %v1055 = vld [vmem:[#allocation11 + $0x60] sm:$0xff]
        %v1056 = vld [vmem:[#allocation11 + $0x68] sm:$0xff]
        %v1057 = vld [vmem:[#allocation11 + $0x70] sm:$0xff]
        %v1058 = vld [vmem:[#allocation11 + $0x78] sm:$0xff]
        %v1059 = vld [vmem:[#allocation16 + $0x3] ss:$0 sm:$0xff]
        %1060 = vmatpush.msra.mxu0 %v1058
        %1061 = vmatpush.msra.mxu0 %v1057
        %1062 = vmatpush.msra.mxu0 %v1056
        %1063 = vmatpush.msra.mxu0 %v1055
        %1064 = vmatpush.msra.mxu0 %v1054
        %1065 = vmatpush.msra.mxu0 %v1053
        %1066 = vmatpush.msra.mxu0 %v1052
        %1067 = vmatpush.msra.mxu0 %v1051
        %1068 = vmatpush.msra.mxu0 %v1050
        %1069 = vmatpush.msra.mxu0 %v1049
        %1070 = vmatpush.msra.mxu0 %v1048
        %1071 = vmatpush.msra.mxu0 %v1047
        %1072 = vmatpush.msra.mxu0 %v1046
        %1073 = vmatpush.msra.mxu0 %v1045
        %1074 = vmatpush.msra.mxu0 %v1044
        %1075 = vmatpush.msra.mxu0 %v1043
        %1076 = vmatmul.f32.gmra.mxu0 %v1011
        %v1077 = vpop.f32.mrf.mxu0
        %v1078 = vadd.f32 %v1059, %v1077
        %1079 = vmatmul.f32.gmra.mxu0 %v1012
        %v1080 = vpop.f32.mrf.mxu0
        %v1081 = vadd.f32 %v1059, %v1080
        %1082 = vmatmul.f32.gmra.mxu0 %v1013
        %v1083 = vpop.f32.mrf.mxu0
        %v1084 = vadd.f32 %v1059, %v1083
        %1085 = vmatmul.f32.gmra.mxu0 %v1014
        %v1086 = vpop.f32.mrf.mxu0
        %v1087 = vadd.f32 %v1059, %v1086
        %1088 = vmatmul.f32.gmra.mxu0 %v1015
        %v1089 = vpop.f32.mrf.mxu0
        %v1090 = vadd.f32 %v1059, %v1089
        %1091 = vmatmul.f32.gmra.mxu0 %v1016
        %v1092 = vpop.f32.mrf.mxu0
        %v1093 = vadd.f32 %v1059, %v1092
        %1094 = vmatmul.f32.gmra.mxu0 %v1017
        %v1095 = vpop.f32.mrf.mxu0
        %v1096 = vadd.f32 %v1059, %v1095
        %1097 = vmatmul.f32.gmra.mxu0 %v1018
        %v1098 = vpop.f32.mrf.mxu0
        %v1099 = vadd.f32 %v1059, %v1098
        %1100 = vmatmul.f32.gmra.mxu0 %v1019
        %v1101 = vpop.f32.mrf.mxu0
        %v1102 = vadd.f32 %v1059, %v1101
        %1103 = vmatmul.f32.gmra.mxu0 %v1020
        %v1104 = vpop.f32.mrf.mxu0
        %v1105 = vadd.f32 %v1059, %v1104
        %1106 = vmatmul.f32.gmra.mxu0 %v1021
        %v1107 = vpop.f32.mrf.mxu0
        %v1108 = vadd.f32 %v1059, %v1107
        %1109 = vmatmul.f32.gmra.mxu0 %v1022
        %v1110 = vpop.f32.mrf.mxu0
        %v1111 = vadd.f32 %v1059, %v1110
        %1112 = vmatmul.f32.gmra.mxu0 %v1023
        %v1113 = vpop.f32.mrf.mxu0
        %v1114 = vadd.f32 %v1059, %v1113
        %1115 = vmatmul.f32.gmra.mxu0 %v1024
        %v1116 = vpop.f32.mrf.mxu0
        %v1117 = vadd.f32 %v1059, %v1116
        %1118 = vmatmul.f32.gmra.mxu0 %v1025
        %v1119 = vpop.f32.mrf.mxu0
        %v1120 = vadd.f32 %v1059, %v1119
        %1121 = vmatmul.f32.gmra.mxu0 %v1026
        %v1122 = vpop.f32.mrf.mxu0
        %v1123 = vadd.f32 %v1059, %v1122
        %1124 = vdwg.mxu0
        %v1125 = vmax.f32 %v1078, 0.0
        %v1126 = vmax.f32 %v1081, 0.0
        %v1127 = vmax.f32 %v1084, 0.0
        %v1128 = vmax.f32 %v1087, 0.0
        %v1129 = vmax.f32 %v1090, 0.0
        %v1130 = vmax.f32 %v1093, 0.0
        %v1131 = vmax.f32 %v1096, 0.0
        %v1132 = vmax.f32 %v1099, 0.0
        %v1133 = vmax.f32 %v1102, 0.0
        %v1134 = vmax.f32 %v1105, 0.0
        %v1135 = vmax.f32 %v1108, 0.0
        %v1136 = vmax.f32 %v1111, 0.0
        %v1137 = vmax.f32 %v1114, 0.0
        %v1138 = vmax.f32 %v1117, 0.0
        %v1139 = vmax.f32 %v1120, 0.0
        %v1140 = vmax.f32 %v1123, 0.0
        %v1141 = vld [vmem:[#allocation13] sm:$0xff]
        %v1142 = vld [vmem:[#allocation13 + $0x8] sm:$0xff]
        %v1143 = vld [vmem:[#allocation13 + $0x10] sm:$0xff]
        %v1144 = vld [vmem:[#allocation13 + $0x18] sm:$0xff]
        %v1145 = vld [vmem:[#allocation13 + $0x20] sm:$0xff]
        %v1146 = vld [vmem:[#allocation13 + $0x28] sm:$0xff]
        %v1147 = vld [vmem:[#allocation13 + $0x30] sm:$0xff]
        %v1148 = vld [vmem:[#allocation13 + $0x38] sm:$0xff]
        %v1149 = vld [vmem:[#allocation13 + $0x40] sm:$0xff]
        %v1150 = vld [vmem:[#allocation13 + $0x48] sm:$0xff]
        %v1151 = vld [vmem:[#allocation13 + $0x50] sm:$0xff]
        %v1152 = vld [vmem:[#allocation13 + $0x58] sm:$0xff]
        %v1153 = vld [vmem:[#allocation13 + $0x60] sm:$0xff]
        %v1154 = vld [vmem:[#allocation13 + $0x68] sm:$0xff]
        %v1155 = vld [vmem:[#allocation13 + $0x70] sm:$0xff]
        %v1156 = vld [vmem:[#allocation13 + $0x78] sm:$0xff]
        %v1157 = vld [vmem:[#allocation16 + $0x4] ss:$0 sm:$0xff]
        %1158 = vmatpush.msra.mxu0 %v1156
        %1159 = vmatpush.msra.mxu0 %v1155
        %1160 = vmatpush.msra.mxu0 %v1154
        %1161 = vmatpush.msra.mxu0 %v1153
        %1162 = vmatpush.msra.mxu0 %v1152
        %1163 = vmatpush.msra.mxu0 %v1151
        %1164 = vmatpush.msra.mxu0 %v1150
        %1165 = vmatpush.msra.mxu0 %v1149
        %1166 = vmatpush.msra.mxu0 %v1148
        %1167 = vmatpush.msra.mxu0 %v1147
        %1168 = vmatpush.msra.mxu0 %v1146
        %1169 = vmatpush.msra.mxu0 %v1145
        %1170 = vmatpush.msra.mxu0 %v1144
        %1171 = vmatpush.msra.mxu0 %v1143
        %1172 = vmatpush.msra.mxu0 %v1142
        %1173 = vmatpush.msra.mxu0 %v1141
        %1174 = vmatmul.f32.gmra.mxu0 %v1125
        %v1175 = vpop.f32.mrf.mxu0
        %v1176 = vadd.f32 %v1157, %v1175
        %1177 = vmatmul.f32.gmra.mxu0 %v1126
        %v1178 = vpop.f32.mrf.mxu0
        %v1179 = vadd.f32 %v1157, %v1178
        %1180 = vmatmul.f32.gmra.mxu0 %v1127
        %v1181 = vpop.f32.mrf.mxu0
        %v1182 = vadd.f32 %v1157, %v1181
        %1183 = vmatmul.f32.gmra.mxu0 %v1128
        %v1184 = vpop.f32.mrf.mxu0
        %v1185 = vadd.f32 %v1157, %v1184
        %1186 = vmatmul.f32.gmra.mxu0 %v1129
        %v1187 = vpop.f32.mrf.mxu0
        %v1188 = vadd.f32 %v1157, %v1187
        %1189 = vmatmul.f32.gmra.mxu0 %v1130
        %v1190 = vpop.f32.mrf.mxu0
        %v1191 = vadd.f32 %v1157, %v1190
        %1192 = vmatmul.f32.gmra.mxu0 %v1131
        %v1193 = vpop.f32.mrf.mxu0
        %v1194 = vadd.f32 %v1157, %v1193
        %1195 = vmatmul.f32.gmra.mxu0 %v1132
        %v1196 = vpop.f32.mrf.mxu0
        %v1197 = vadd.f32 %v1157, %v1196
        %1198 = vmatmul.f32.gmra.mxu0 %v1133
        %v1199 = vpop.f32.mrf.mxu0
        %v1200 = vadd.f32 %v1157, %v1199
        %1201 = vmatmul.f32.gmra.mxu0 %v1134
        %v1202 = vpop.f32.mrf.mxu0
        %v1203 = vadd.f32 %v1157, %v1202
        %1204 = vmatmul.f32.gmra.mxu0 %v1135
        %v1205 = vpop.f32.mrf.mxu0
        %v1206 = vadd.f32 %v1157, %v1205
        %1207 = vmatmul.f32.gmra.mxu0 %v1136
        %v1208 = vpop.f32.mrf.mxu0
        %v1209 = vadd.f32 %v1157, %v1208
        %1210 = vmatmul.f32.gmra.mxu0 %v1137
        %v1211 = vpop.f32.mrf.mxu0
        %v1212 = vadd.f32 %v1157, %v1211
        %1213 = vmatmul.f32.gmra.mxu0 %v1138
        %v1214 = vpop.f32.mrf.mxu0
        %v1215 = vadd.f32 %v1157, %v1214
        %1216 = vmatmul.f32.gmra.mxu0 %v1139
        %v1217 = vpop.f32.mrf.mxu0
        %v1218 = vadd.f32 %v1157, %v1217
        %1219 = vmatmul.f32.gmra.mxu0 %v1140
        %v1220 = vpop.f32.mrf.mxu0
        %v1221 = vadd.f32 %v1157, %v1220
        %1222 = vdwg.mxu0
        %v1223 = vmax.f32 %v1176, 0.0
        %v1224 = vmax.f32 %v1179, 0.0
        %v1225 = vmax.f32 %v1182, 0.0
        %v1226 = vmax.f32 %v1185, 0.0
        %v1227 = vmax.f32 %v1188, 0.0
        %v1228 = vmax.f32 %v1191, 0.0
        %v1229 = vmax.f32 %v1194, 0.0
        %v1230 = vmax.f32 %v1197, 0.0
        %v1231 = vmax.f32 %v1200, 0.0
        %v1232 = vmax.f32 %v1203, 0.0
        %v1233 = vmax.f32 %v1206, 0.0
        %v1234 = vmax.f32 %v1209, 0.0
        %v1235 = vmax.f32 %v1212, 0.0
        %v1236 = vmax.f32 %v1215, 0.0
        %v1237 = vmax.f32 %v1218, 0.0
        %v1238 = vmax.f32 %v1221, 0.0
        %v1239 = vld [vmem:[#allocation14] sm:$0xff]
        %v1240 = vld [vmem:[#allocation14 + $0x8] sm:$0xff]
        %v1241 = vld [vmem:[#allocation14 + $0x10] sm:$0xff]
        %v1242 = vld [vmem:[#allocation14 + $0x18] sm:$0xff]
        %v1243 = vld [vmem:[#allocation14 + $0x20] sm:$0xff]
        %v1244 = vld [vmem:[#allocation14 + $0x28] sm:$0xff]
        %v1245 = vld [vmem:[#allocation14 + $0x30] sm:$0xff]
        %v1246 = vld [vmem:[#allocation14 + $0x38] sm:$0xff]
        %v1247 = vld [vmem:[#allocation14 + $0x40] sm:$0xff]
        %v1248 = vld [vmem:[#allocation14 + $0x48] sm:$0xff]
        %v1249 = vld [vmem:[#allocation14 + $0x50] sm:$0xff]
        %v1250 = vld [vmem:[#allocation14 + $0x58] sm:$0xff]
        %v1251 = vld [vmem:[#allocation14 + $0x60] sm:$0xff]
        %v1252 = vld [vmem:[#allocation14 + $0x68] sm:$0xff]
        %v1253 = vld [vmem:[#allocation14 + $0x70] sm:$0xff]
        %v1254 = vld [vmem:[#allocation14 + $0x78] sm:$0xff]
        %v1255 = vld [vmem:[#allocation16 + $0x5] ss:$0 sm:$0xff]
        %1256 = vmatpush.msra.mxu0 %v1254
        %1257 = vmatpush.msra.mxu0 %v1253
        %1258 = vmatpush.msra.mxu0 %v1252
        %1259 = vmatpush.msra.mxu0 %v1251
        %1260 = vmatpush.msra.mxu0 %v1250
        %1261 = vmatpush.msra.mxu0 %v1249
        %1262 = vmatpush.msra.mxu0 %v1248
        %1263 = vmatpush.msra.mxu0 %v1247
        %1264 = vmatpush.msra.mxu0 %v1246
        %1265 = vmatpush.msra.mxu0 %v1245
        %1266 = vmatpush.msra.mxu0 %v1244
        %1267 = vmatpush.msra.mxu0 %v1243
        %1268 = vmatpush.msra.mxu0 %v1242
        %1269 = vmatpush.msra.mxu0 %v1241
        %1270 = vmatpush.msra.mxu0 %v1240
        %1271 = vmatpush.msra.mxu0 %v1239
        %1272 = vmatmul.f32.gmra.mxu0 %v1223
        %v1273 = vpop.f32.mrf.mxu0
        %v1274 = vadd.f32 %v1255, %v1273
        %1275 = vmatmul.f32.gmra.mxu0 %v1224
        %v1276 = vpop.f32.mrf.mxu0
        %v1277 = vadd.f32 %v1255, %v1276
        %1278 = vmatmul.f32.gmra.mxu0 %v1225
        %v1279 = vpop.f32.mrf.mxu0
        %v1280 = vadd.f32 %v1255, %v1279
        %1281 = vmatmul.f32.gmra.mxu0 %v1226
        %v1282 = vpop.f32.mrf.mxu0
        %v1283 = vadd.f32 %v1255, %v1282
        %1284 = vmatmul.f32.gmra.mxu0 %v1227
        %v1285 = vpop.f32.mrf.mxu0
        %v1286 = vadd.f32 %v1255, %v1285
        %1287 = vmatmul.f32.gmra.mxu0 %v1228
        %v1288 = vpop.f32.mrf.mxu0
        %v1289 = vadd.f32 %v1255, %v1288
        %1290 = vmatmul.f32.gmra.mxu0 %v1229
        %v1291 = vpop.f32.mrf.mxu0
        %v1292 = vadd.f32 %v1255, %v1291
        %1293 = vmatmul.f32.gmra.mxu0 %v1230
        %v1294 = vpop.f32.mrf.mxu0
        %v1295 = vadd.f32 %v1255, %v1294
        %1296 = vmatmul.f32.gmra.mxu0 %v1231
        %v1297 = vpop.f32.mrf.mxu0
        %v1298 = vadd.f32 %v1255, %v1297
        %1299 = vmatmul.f32.gmra.mxu0 %v1232
        %v1300 = vpop.f32.mrf.mxu0
        %v1301 = vadd.f32 %v1255, %v1300
        %1302 = vmatmul.f32.gmra.mxu0 %v1233
        %v1303 = vpop.f32.mrf.mxu0
        %v1304 = vadd.f32 %v1255, %v1303
        %1305 = vmatmul.f32.gmra.mxu0 %v1234
        %v1306 = vpop.f32.mrf.mxu0
        %v1307 = vadd.f32 %v1255, %v1306
        %1308 = vmatmul.f32.gmra.mxu0 %v1235
        %v1309 = vpop.f32.mrf.mxu0
        %v1310 = vadd.f32 %v1255, %v1309
        %1311 = vmatmul.f32.gmra.mxu0 %v1236
        %v1312 = vpop.f32.mrf.mxu0
        %v1313 = vadd.f32 %v1255, %v1312
        %1314 = vmatmul.f32.gmra.mxu0 %v1237
        %v1315 = vpop.f32.mrf.mxu0
        %v1316 = vadd.f32 %v1255, %v1315
        %1317 = vmatmul.f32.gmra.mxu0 %v1238
        %v1318 = vpop.f32.mrf.mxu0
        %v1319 = vadd.f32 %v1255, %v1318
        %1320 = vdwg.mxu0
        %1321 = vst [vmem:[%s545] sm:$0xff] %v1274
        %1322 = vst [vmem:[%s545 + $0x8] sm:$0xff] %v1277
        %1323 = vst [vmem:[%s545 + $0x10] sm:$0xff] %v1280
        %1324 = vst [vmem:[%s545 + $0x18] sm:$0xff] %v1283
        %1325 = vst [vmem:[%s545 + $0x20] sm:$0xff] %v1286
        %1326 = vst [vmem:[%s545 + $0x28] sm:$0xff] %v1289
        %1327 = vst [vmem:[%s545 + $0x30] sm:$0xff] %v1292
        %1328 = vst [vmem:[%s545 + $0x38] sm:$0xff] %v1295
        %1329 = vst [vmem:[%s545 + $0x40] sm:$0xff] %v1298
        %1330 = vst [vmem:[%s545 + $0x48] sm:$0xff] %v1301
        %1331 = vst [vmem:[%s545 + $0x50] sm:$0xff] %v1304
        %1332 = vst [vmem:[%s545 + $0x58] sm:$0xff] %v1307
        %1333 = vst [vmem:[%s545 + $0x60] sm:$0xff] %v1310
        %1334 = vst [vmem:[%s545 + $0x68] sm:$0xff] %v1313
        %1335 = vst [vmem:[%s545 + $0x70] sm:$0xff] %v1316
        %1336 = vst [vmem:[%s545 + $0x78] sm:$0xff] %v1319
        %s1337 = sand.u32 %s244, 1
        %s1338 = scalar_lea.sflag [#allocation4], %s1337
        %s1339 = sand.u32 %s244, 1
        %s1340 = smul.addr %s1339, 128
        %s1341 = scalar_lea.vmem [#allocation17], %s1340
        %s1342 = sand.u32 %s270, 1
        %s1343 = scalar_lea.sflag [#allocation19], %s1342
        %s1344 = sand.u32 %s270, 1
        %s1345 = smul.addr %s1344, 128
        %s1346 = scalar_lea.vmem [#allocation18], %s1345
        // Predicated region
        $region93: #{tpu_custom_call.1} parent=55 // pred_check
          %p1347 = pneg %p254
        $region94: #{tpu_custom_call.1} parent=55 // pred_check_branch
          %1349 = sbr.rel (%p1347) target = $region96
        $region95: #{tpu_custom_call.1} parent=55 // pred_region
          %s1350 = smul.u32 16, %s37
          %1352 = vsyncadd %s1338, 0
          %s1353 = smul.addr %s1350, 8
          %s1354 = scalar_lea.hbm %s9, %s1353
          %s1355 = sshll.u32 %s1341, 4
          %s1356 = int_to_ptr.vmem [resolvable:$true] %s1355
          %s1357 = sshll.u32 %s1354, 4
          %s1358 = int_to_ptr.hbm [resolvable:$true] %s1357
          %1363 = dma.vmem_to_hbm [thread:$0]  %s1356, 2048, %s1358, %s1338, 128, 128, 8
        $region96: #{tpu_custom_call.1} parent=55 // pred_fallthru
          _
        // Predicated region
        $region97: #{tpu_custom_call.1} parent=55 // pred_check
          %p1364 = pneg %p280
        $region98: #{tpu_custom_call.1} parent=55 // pred_check_branch
          %1366 = sbr.rel (%p1364) target = $region100
        $region99: #{tpu_custom_call.1} parent=55 // pred_region
          %s1367 = smul.u32 16, %s37
          %1369 = vsyncadd %s1343, 0
          %s1370 = smul.addr %s1367, 8
          %s1371 = scalar_lea.hbm %s10, %s1370
          %s1372 = sshll.u32 %s1346, 4
          %s1373 = int_to_ptr.vmem [resolvable:$true] %s1372
          %s1374 = sshll.u32 %s1371, 4
          %s1375 = int_to_ptr.hbm [resolvable:$true] %s1374
          %1380 = dma.vmem_to_hbm [thread:$0]  %s1373, 2048, %s1375, %s1343, 128, 128, 8
        $region100: #{tpu_custom_call.1} parent=55 // pred_fallthru
          _
      $region56: #{tpu_custom_call.1} parent=5 // pred_fallthru
        _
      %p1381 = scmp.le.s32.totalorder 2, %s32
      // Predicated region
      $region101: #{tpu_custom_call.1} parent=5 // pred_check
        %p1382 = pneg %p1381
      $region102: #{tpu_custom_call.1} parent=5 // pred_check_branch
        %1384 = sbr.rel (%p1382) target = $region104
      $region103: #{tpu_custom_call.1} parent=5 // pred_region
        %s1385 = ssub.s32 %s32, 2
        // Predicated region
        $region105: #{tpu_custom_call.1} parent=103 // pred_check
          %p1386 = pneg %p260
        $region106: #{tpu_custom_call.1} parent=103 // pred_check_branch
          %1388 = sbr.rel (%p1386) target = $region108
        $region107: #{tpu_custom_call.1} parent=103 // pred_region
          %s1389 = sand.u32 %s245, 1
          %s1390 = scalar_lea.sflag [#allocation4], %s1389
          %s1391 = sand.u32 %s245, 1
          %s1392 = smul.addr %s1391, 128
          %s1393 = scalar_lea.vmem [#allocation17], %s1392
          %1395 = dma.done %s1390, 2048
        $region108: #{tpu_custom_call.1} parent=103 // pred_fallthru
          _
        // Predicated region
        $region109: #{tpu_custom_call.1} parent=103 // pred_check
          %p1396 = pneg %p286
        $region110: #{tpu_custom_call.1} parent=103 // pred_check_branch
          %1398 = sbr.rel (%p1396) target = $region112
        $region111: #{tpu_custom_call.1} parent=103 // pred_region
          %s1399 = sand.u32 %s271, 1
          %s1400 = scalar_lea.sflag [#allocation19], %s1399
          %s1401 = sand.u32 %s271, 1
          %s1402 = smul.addr %s1401, 128
          %s1403 = scalar_lea.vmem [#allocation18], %s1402
          %1405 = dma.done %s1400, 2048
        $region112: #{tpu_custom_call.1} parent=103 // pred_fallthru
          _
      $region104: #{tpu_custom_call.1} parent=5 // pred_fallthru
        _
    $region6: #{tpu_custom_call.1} parent=1 // loop_footer
      %s36 = sadd.s32 1, %s32
    $region7: #{tpu_custom_call.1} parent=1 // loop_footer_branch
      %31 = sbr.rel target = $region3
    $region8: #{tpu_custom_call.1} parent=1 // loop_exit
      _
    %1406 = vsyncpa [#allocation3], 1
    %s1407 = scalar_lea.sflag [#allocation3], 1
    %1408 = vsyncpa %s1407, 1
    %1409 = vsyncpa [#allocation6], 1
    %s1410 = scalar_lea.sflag [#allocation6], 1
    %1411 = vsyncpa %s1410, 1
    %1412 = vsyncpa [#allocation9], 1
    %1413 = vsyncpa [#allocation12], 1
    %1414 = vsyncpa [#allocation15], 1
    %1415 = vsyncpa [#allocation4], 1
    %s1416 = scalar_lea.sflag [#allocation4], 1
    %1417 = vsyncpa %s1416, 1
    %1418 = vsyncpa [#allocation19], 1
    %s1419 = scalar_lea.sflag [#allocation19], 1
    %1420 = vsyncpa %s1419, 1

</llo_original>
